<compile_context>
chip_gen: v6e
topology: v6e:2x2x1
jax: 0.10.0
libtpu: 0.0.40
codegen_flags: <defaults>
</compile_context>

<pallas_src>
import numpy as np
import jax
import jax.numpy as jnp
from jax import lax
from jax.experimental import pallas as pl
from jax.experimental.pallas import tpu as pltpu


def _round_up(x, m):
    return ((x + m - 1) // m) * m


def _pick_t_tile(T, Np, MP, B):
    """Largest time tile that divides T and keeps VMEM use ~20 MiB (fits the
    default scoped-VMEM limit on v5e/v6e and v7x's smaller 64 MiB VMEM)."""
    budget = 20 * 2**20
    for cand in (2048, 1024, 512, 256, 128, 64, 32, 16, 8):
        if T % cand != 0:
            continue
        w = cand + 2 * (B // 2)
        est = 4 * (2 * w * Np + 2 * cand * MP + 8 * cand * max(Np, MP))
        if est <= budget:
            return cand
    return T


def _make_kernel(B, t_tile, w_win, MP, root_list):
    """Kernel body with the static tree structure closed over."""

    def kernel(xpad_hbm, ksyn_ref, mask_ref, theta_ref, expc_ref, cmask_ref,
               out_ref, xbuf, sem):
        i = pl.program_id(0)
        n_t = pl.num_programs(0)
        slot = i % 2

        def window_copy(tile, slot_):
            start = tile * t_tile
            if t_tile % 8 == 0:
                start = pl.multiple_of(start, 8)
            return pltpu.make_async_copy(
                xpad_hbm.at[pl.ds(start, w_win)], xbuf.at[slot_], sem.at[slot_])

        # Prime the pipeline, then prefetch tile i+1 while computing tile i.
        @pl.when(i == 0)
        def _():
            window_copy(i, slot).start()

        @pl.when(i + 1 < n_t)
        def _():
            window_copy(i + 1, (i + 1) % 2).start()

        window_copy(i, slot).wait()

        xb = xbuf[slot]                      # (w_win, Np) window, now in VMEM
        kv = ksyn_ref[...]                   # (B, Np) per-synapse tap coeffs

        # ---- B-tap temporal filter (depthwise conv, per-synapse coeffs) ----
        # filt[t, n] = sum_k window[t + k, n] * K[k, n]
        filt = xb[0:t_tile, :] * kv[0:1, :]
        for k in range(1, B):
            filt = filt + xb[k:k + t_tile, :] * kv[k:k + 1, :]

        # ---- synapse -> subunit reduction on the MXU (lanes padded to MP) ----
        sub_in = jnp.dot(filt, mask_ref[...],
                         preferred_element_type=jnp.float32)      # (t_tile, MP)

        def sig(x):
            return 0.5 * jnp.tanh(0.5 * x) + 0.5                  # EUP tanh

        theta = theta_ref[...]                                    # (1, MP)
        expc = expc_ref[...]                                      # (1, MP)

        # All leaf sigmoids (and provisional parent values) in one full-width
        # pass; padded lanes have theta=0, expc=0 -> 0.
        out = sig(sub_in - theta) * expc                          # (t_tile, MP)

        # Dendritic-tree recursion over parents, deepest first (static unroll).
        lane = lax.broadcasted_iota(jnp.int32, (1, MP), 1)
        for j, r in enumerate(root_list):
            cm = cmask_ref[pl.ds(j, 1), :]                        # (1, MP)
            child_sum = jnp.sum(out * cm, axis=1, keepdims=True)  # (t_tile, 1)
            acc = sub_in[:, r:r + 1] + child_sum
            new_col = sig(acc - theta[0:1, r:r + 1]) * expc[0:1, r:r + 1]
            out = jnp.where(lane == r, new_col, out)

        out_ref[...] = out                                        # lane-dense

    return kernel


def hglm_forward(X, C_den, C_syn, B, G, Tau, Delta, W, Cparam, Theta, V_o,
                 t_tile=None):
    """X: (T, N_syn) float32.  Returns (T,) float32, matching hGLM.forward."""
    X = jnp.asarray(X, jnp.float32)
    T, N = X.shape
    cden = np.asarray(C_den)
    M = int(cden.shape[0])
    Gnp = np.asarray(G).astype(np.int64)
    G_no = int(Gnp.max()) + 1
    assert B % 2 == 1, "B must be odd (conv1d with padding=B//2 keeps length T)"
    pad = B // 2

    Np = _round_up(max(N, 128), 128)      # synapse lanes
    MP = _round_up(max(M, 128), 128)      # subunit lanes (lane-dense tree/output)

    # ---- per-group temporal kernels (tiny, plain JAX glue) ----
    Tau = jnp.asarray(Tau, jnp.float32)
    W = jnp.asarray(W, jnp.float32)
    t = jnp.arange(B, dtype=jnp.float32) - jnp.exp(jnp.float32(Delta))
    t = jnp.where(t < 0.0, 0.0, t)
    half = G_no // 2
    kerns = []
    for g in range(G_no):
        if g < half:
            tf = t / jnp.exp(Tau[g])
            ts = t / (jnp.exp(Tau[g]) * 2.8 + 10.4)
            kg = (ts * jnp.exp(-ts) * 0.3 + tf * jnp.exp(-tf)) / 1.3
        else:
            tt = t / jnp.exp(Tau[g])
            kg = tt * jnp.exp(-tt)
        kerns.append(kg)
    kerns = jnp.stack(kerns)                                   # (G_no, B)
    Ksyn = (kerns[Gnp] * W[Gnp][:, None]).T                    # (B, N): kern * W
    Ksyn = jnp.pad(Ksyn, ((0, 0), (0, Np - N)))                # (B, Np)

    maskp = np.zeros((Np, MP), np.float32)
    maskp[:N, :M] = (np.abs(np.asarray(C_syn)) > 0).astype(np.float32).T
    theta_row = jnp.pad(jnp.asarray(Theta, jnp.float32)[None, :],
                        ((0, 0), (0, MP - M)))
    expc_row = jnp.pad(jnp.exp(jnp.asarray(Cparam, jnp.float32))[None, :],
                       ((0, 0), (0, MP - M)))

    # ---- static dendritic tree structure from C_den (host side) ----
    root = (np.flip(np.unique(cden)) - 1)[:-1].astype(int)
    root_list = [int(r) for r in root]
    n_roots = max(1, len(root_list))
    cmask = np.zeros((n_roots, MP), np.float32)
    for j, r in enumerate(root_list):
        cmask[j, np.where(cden == r + 1)[0]] = 1.0

    # ---- tiling ----
    if t_tile is None:
        t_tile = _pick_t_tile(T, Np, MP, B)
    assert T % t_tile == 0
    n_t = T // t_tile
    w_win = t_tile + 2 * pad

    # TODO(synk): fuse this padding into the manual DMA (boundary-cased copies)
    # to avoid one extra HBM pass over X.
    xpad = jnp.pad(X, ((pad, pad), (0, Np - N)))               # (T + 2*pad, Np)

    kernel = _make_kernel(B, t_tile, w_win, MP, root_list)

    grid_spec = pltpu.PrefetchScalarGridSpec(
        num_scalar_prefetch=0,
        grid=(n_t,),
        in_specs=[
            pl.BlockSpec(memory_space=pl.ANY),                 # xpad stays in HBM
            pl.BlockSpec((B, Np), lambda i: (0, 0)),           # tap coeffs (resident)
            pl.BlockSpec((Np, MP), lambda i: (0, 0)),          # synapse->subunit mask
            pl.BlockSpec((1, MP), lambda i: (0, 0)),           # Theta row
            pl.BlockSpec((1, MP), lambda i: (0, 0)),           # exp(C) row
            pl.BlockSpec((n_roots, MP), lambda i: (0, 0)),     # per-parent child mask
        ],
        out_specs=pl.BlockSpec((t_tile, MP), lambda i: (i, 0)),
        scratch_shapes=[
            pltpu.VMEM((2, w_win, Np), jnp.float32),           # double-buffered window
            pltpu.SemaphoreType.DMA((2,)),
        ],
    )

    # Manual prefetch carries DMA state across grid steps -> time axis stays
    # "arbitrary" (v7x 2-TC sharding would need carry-free halo re-reads).
    est_vmem = 4 * (2 * w_win * Np + 2 * t_tile * MP + B * Np + Np * MP
                    + (n_roots + 2) * MP + 8 * t_tile * max(Np, MP))
    cp = dict(dimension_semantics=("arbitrary",))
    if est_vmem > 32 * 2**20:
        cp["vmem_limit_bytes"] = int(min(est_vmem * 5 // 4, 100 * 2**20))

    slab = pl.pallas_call(
        kernel,
        out_shape=jax.ShapeDtypeStruct((T, MP), jnp.float32),
        grid_spec=grid_spec,
        compiler_params=pltpu.CompilerParams(**cp),
    )(xpad, Ksyn, jnp.asarray(maskp), theta_row, expc_row, jnp.asarray(cmask))

    return slab[:, 0] + jnp.float32(V_o)


def reference_forward(Xnp, C_den, C_syn, B, G, Tau, Delta, W, Cparam, Theta, V_o):
    """Pure NumPy mirror of hGLM.forward for verification."""
    T, N = Xnp.shape
    M = C_den.shape[0]
    G_no = int(G.max()) + 1
    pad = B // 2

    t = np.arange(B).astype(np.float64) - np.exp(Delta)
    t[t < 0.0] = 0.0
    filtered_in = np.zeros((T, N), np.float64)
    for g in range(G_no):
        if g < G_no // 2:
            tf = t / np.exp(Tau[g])
            ts = t / (np.exp(Tau[g]) * 2.8 + 10.4)
            kern = (ts * np.exp(-ts) * 0.3 + tf * np.exp(-tf)) / 1.3
        else:
            tt = t / np.exp(Tau[g])
            kern = tt * np.exp(-tt)
        idx = np.where(G == g)[0]
        xp = np.pad(Xnp[:, idx].astype(np.float64), ((pad, pad), (0, 0)))
        for j, n in enumerate(idx):
            # F.conv1d is cross-correlation: out[t] = sum_k xpad[t+k] * kern[k]
            filtered_in[:, n] = np.correlate(xp[:, j], kern, mode="valid") * W[g]

    subunit_in = filtered_in @ (np.abs(C_syn) > 0).astype(np.float64).T  # (T, M)

    root = (np.flip(np.unique(C_den)) - 1)[:-1].astype(int)
    subunit_out = np.zeros((T, M), np.float64)

    def sig(x):
        return 1.0 / (1.0 + np.exp(-x))

    for m in range(M):
        if m not in root:
            subunit_out[:, m] = sig(subunit_in[:, m] - Theta[m]) * np.exp(Cparam[m])
    for r in root:
        acc = subunit_in[:, r].copy()
        for k in np.where(C_den == r + 1)[0]:
            acc = acc + subunit_out[:, k]
        subunit_out[:, r] = sig(acc - Theta[r]) * np.exp(Cparam[r])
    return (subunit_out[:, 0] + V_o).astype(np.float32)


if __name__ == "__main__":
    # small, consistent shapes
    T, N, M, B, G_no = 128, 32, 4, 9, 4

    # dendritic tree: subunit 0 = root; 1,2 children of 0; 3 child of 1
    C_den = np.array([0, 1, 1, 2], dtype=np.float32)
    G = (np.arange(N) % G_no).astype(np.int64)
    C_syn = np.zeros((M, N), dtype=np.float32)
    for n in range(N):
        C_syn[n % M, n] = 1.0 if G[n] < G_no // 2 else -1.0
    Ensyn = None  # unused by forward, as in the PyTorch module

    # deterministic parameters matching hGLM.__init__
    V_o = np.float32(-69.0)
    Tau = np.full(G_no, 1.4, np.float32)                       # Tau_raw * 1.4
    Delta = np.float32(0.25)
    W = np.where(np.arange(G_no) < G_no // 2, 2.0, -1.0).astype(np.float32) * 0.05
    Cparam = np.ones(M, np.float32)
    Theta = np.zeros(M, np.float32)

    key = jax.random.PRNGKey(0)
    X = jax.random.normal(key, (T, N), dtype=jnp.float32)

    out = hglm_forward(X, C_den, C_syn, B, G, Tau, Delta, W, Cparam, Theta, V_o)
    out = jax.block_until_ready(out)
    assert out.shape == (T,)

    ref = reference_forward(np.asarray(X), C_den, C_syn, B, G,
                            Tau.astype(np.float64), float(Delta),
                            W.astype(np.float64), Cparam.astype(np.float64),
                            Theta.astype(np.float64), float(V_o))
    np.testing.assert_allclose(np.asarray(out), ref, rtol=1e-4, atol=1e-4)
    print("KERNEL_OK")
</pallas_src>

<mosaic_0001>
module attributes {stable_mosaic.version = 11 : i64} {
  func.func @kernel(%arg0: i32, %arg1: memref<136x128xf32, #tpu.memory_space<any>>, %arg2: memref<9x128xf32, #tpu.memory_space<vmem>>, %arg3: memref<128x128xf32, #tpu.memory_space<vmem>>, %arg4: memref<1x128xf32, #tpu.memory_space<vmem>>, %arg5: memref<1x128xf32, #tpu.memory_space<vmem>>, %arg6: memref<2x128xf32, #tpu.memory_space<vmem>>, %arg7: memref<128x128xf32, #tpu.memory_space<vmem>>, %arg8: memref<2x136x128xf32, #tpu.memory_space<vmem>>, %arg9: memref<2x!tpu.dma_semaphore, #tpu.memory_space<semaphore_mem>>) attributes {dimension_semantics = [#tpu.dimension_semantics<arbitrary>], iteration_bounds = array<i64: 1>, scalar_prefetch = 0 : i64, scratch_operands = 2 : i64, tpu.core_type = #tpu.core_type<tc>, window_params = [{}, {pipeline_mode = #tpu.pipeline_mode<synchronous>, transform_indices = @transform_1, window_bounds = array<i64: 9, 128>}, {pipeline_mode = #tpu.pipeline_mode<synchronous>, transform_indices = @transform_2, window_bounds = array<i64: 128, 128>}, {pipeline_mode = #tpu.pipeline_mode<synchronous>, transform_indices = @transform_3, window_bounds = array<i64: 1, 128>}, {pipeline_mode = #tpu.pipeline_mode<synchronous>, transform_indices = @transform_4, window_bounds = array<i64: 1, 128>}, {pipeline_mode = #tpu.pipeline_mode<synchronous>, transform_indices = @transform_5, window_bounds = array<i64: 2, 128>}, {transform_indices = @transform_6, window_bounds = array<i64: 128, 128>}]} {
    %c2_i32 = arith.constant 2 : i32
    %c0_i32 = arith.constant 0 : i32
    %0 = arith.cmpi eq, %c2_i32, %c0_i32 : i32
    %c1_i32 = arith.constant 1 : i32
    %1 = arith.select %0, %c1_i32, %c2_i32 : i32
    %2 = arith.remsi %arg0, %1 : i32
    %c0_i32_0 = arith.constant 0 : i32
    %3 = arith.cmpi ne, %2, %c0_i32_0 : i32
    %c0_i32_1 = arith.constant 0 : i32
    %4 = arith.cmpi slt, %2, %c0_i32_1 : i32
    %c0_i32_2 = arith.constant 0 : i32
    %5 = arith.cmpi slt, %1, %c0_i32_2 : i32
    %6 = arith.xori %4, %5 : i1
    %7 = arith.andi %6, %3 : i1
    %8 = arith.addi %2, %1 : i32
    %9 = arith.select %7, %8, %2 : i32
    %c0_i32_3 = arith.constant 0 : i32
    %10 = arith.cmpi eq, %arg0, %c0_i32_3 : i32
    %11 = arith.extui %10 : i1 to i32
    %c0_i32_4 = arith.constant 0 : i32
    %12 = arith.cmpi ne, %11, %c0_i32_4 : i32
    scf.if %12 {
      %c128_i32_38 = arith.constant 128 : i32
      %143 = arith.muli %arg0, %c128_i32_38 : i32
      %144 = tpu.assume_multiple %143, 8 : i32
      %c0_i32_39 = arith.constant 0 : i32
      %145 = tpu.memref_slice %arg1[%144, %c0_i32_39] : memref<136x128xf32, #tpu.memory_space<any>> -> memref<136x128xf32, #tpu.memory_space<any>>
      %c0_i32_40 = arith.constant 0 : i32
      %c0_i32_41 = arith.constant 0 : i32
      %146 = tpu.memref_slice %arg8[%9, %c0_i32_40, %c0_i32_41] : memref<2x136x128xf32, #tpu.memory_space<vmem>> -> memref<1x136x128xf32, #tpu.memory_space<vmem>>
      %147 = tpu.memref_squeeze %146 : memref<1x136x128xf32, #tpu.memory_space<vmem>> -> memref<136x128xf32, #tpu.memory_space<vmem>>
      %148 = tpu.memref_slice %arg9[%9] : memref<2x!tpu.dma_semaphore, #tpu.memory_space<semaphore_mem>> -> memref<1x!tpu.dma_semaphore, #tpu.memory_space<semaphore_mem>>
      %149 = tpu.memref_squeeze %148 : memref<1x!tpu.dma_semaphore, #tpu.memory_space<semaphore_mem>> -> memref<!tpu.dma_semaphore, #tpu.memory_space<semaphore_mem>>
      tpu.enqueue_dma source(%145 : memref<136x128xf32, #tpu.memory_space<any>>) target(%147 : memref<136x128xf32, #tpu.memory_space<vmem>>) target_semaphore(%149 : memref<!tpu.dma_semaphore, #tpu.memory_space<semaphore_mem>>)
    } else {
    }
    %c1_i32_5 = arith.constant 1 : i32
    %13 = arith.addi %arg0, %c1_i32_5 : i32
    %c1_i32_6 = arith.constant 1 : i32
    %14 = arith.cmpi slt, %13, %c1_i32_6 : i32
    %15 = arith.extui %14 : i1 to i32
    %c0_i32_7 = arith.constant 0 : i32
    %16 = arith.cmpi ne, %15, %c0_i32_7 : i32
    scf.if %16 {
      %c1_i32_38 = arith.constant 1 : i32
      %143 = arith.addi %arg0, %c1_i32_38 : i32
      %c1_i32_39 = arith.constant 1 : i32
      %144 = arith.addi %arg0, %c1_i32_39 : i32
      %c2_i32_40 = arith.constant 2 : i32
      %c0_i32_41 = arith.constant 0 : i32
      %145 = arith.cmpi eq, %c2_i32_40, %c0_i32_41 : i32
      %c1_i32_42 = arith.constant 1 : i32
      %146 = arith.select %145, %c1_i32_42, %c2_i32_40 : i32
      %147 = arith.remsi %144, %146 : i32
      %c0_i32_43 = arith.constant 0 : i32
      %148 = arith.cmpi ne, %147, %c0_i32_43 : i32
      %c0_i32_44 = arith.constant 0 : i32
      %149 = arith.cmpi slt, %147, %c0_i32_44 : i32
      %c0_i32_45 = arith.constant 0 : i32
      %150 = arith.cmpi slt, %146, %c0_i32_45 : i32
      %151 = arith.xori %149, %150 : i1
      %152 = arith.andi %151, %148 : i1
      %153 = arith.addi %147, %146 : i32
      %154 = arith.select %152, %153, %147 : i32
      %c128_i32_46 = arith.constant 128 : i32
      %155 = arith.muli %143, %c128_i32_46 : i32
      %156 = tpu.assume_multiple %155, 8 : i32
      %c0_i32_47 = arith.constant 0 : i32
      %157 = tpu.memref_slice %arg1[%156, %c0_i32_47] : memref<136x128xf32, #tpu.memory_space<any>> -> memref<136x128xf32, #tpu.memory_space<any>>
      %c0_i32_48 = arith.constant 0 : i32
      %c0_i32_49 = arith.constant 0 : i32
      %158 = tpu.memref_slice %arg8[%154, %c0_i32_48, %c0_i32_49] : memref<2x136x128xf32, #tpu.memory_space<vmem>> -> memref<1x136x128xf32, #tpu.memory_space<vmem>>
      %159 = tpu.memref_squeeze %158 : memref<1x136x128xf32, #tpu.memory_space<vmem>> -> memref<136x128xf32, #tpu.memory_space<vmem>>
      %160 = tpu.memref_slice %arg9[%154] : memref<2x!tpu.dma_semaphore, #tpu.memory_space<semaphore_mem>> -> memref<1x!tpu.dma_semaphore, #tpu.memory_space<semaphore_mem>>
      %161 = tpu.memref_squeeze %160 : memref<1x!tpu.dma_semaphore, #tpu.memory_space<semaphore_mem>> -> memref<!tpu.dma_semaphore, #tpu.memory_space<semaphore_mem>>
      tpu.enqueue_dma source(%157 : memref<136x128xf32, #tpu.memory_space<any>>) target(%159 : memref<136x128xf32, #tpu.memory_space<vmem>>) target_semaphore(%161 : memref<!tpu.dma_semaphore, #tpu.memory_space<semaphore_mem>>)
    } else {
    }
    %c128_i32 = arith.constant 128 : i32
    %17 = arith.muli %arg0, %c128_i32 : i32
    %18 = tpu.assume_multiple %17, 8 : i32
    %c0_i32_8 = arith.constant 0 : i32
    %19 = tpu.memref_slice %arg1[%18, %c0_i32_8] : memref<136x128xf32, #tpu.memory_space<any>> -> memref<136x128xf32, #tpu.memory_space<any>>
    %c0_i32_9 = arith.constant 0 : i32
    %c0_i32_10 = arith.constant 0 : i32
    %20 = tpu.memref_slice %arg8[%9, %c0_i32_9, %c0_i32_10] : memref<2x136x128xf32, #tpu.memory_space<vmem>> -> memref<1x136x128xf32, #tpu.memory_space<vmem>>
    %21 = tpu.memref_squeeze %20 : memref<1x136x128xf32, #tpu.memory_space<vmem>> -> memref<136x128xf32, #tpu.memory_space<vmem>>
    %22 = tpu.memref_slice %arg9[%9] : memref<2x!tpu.dma_semaphore, #tpu.memory_space<semaphore_mem>> -> memref<1x!tpu.dma_semaphore, #tpu.memory_space<semaphore_mem>>
    %23 = tpu.memref_squeeze %22 : memref<1x!tpu.dma_semaphore, #tpu.memory_space<semaphore_mem>> -> memref<!tpu.dma_semaphore, #tpu.memory_space<semaphore_mem>>
    tpu.wait_dma2 semaphore(%23 : memref<!tpu.dma_semaphore, #tpu.memory_space<semaphore_mem>>) src(%19 : memref<136x128xf32, #tpu.memory_space<any>>) dst(%21 : memref<136x128xf32, #tpu.memory_space<vmem>>)
    %24 = arith.index_cast %9 : i32 to index
    %c0 = arith.constant 0 : index
    %c0_11 = arith.constant 0 : index
    %25 = vector.load %arg8[%24, %c0, %c0_11] : memref<2x136x128xf32, #tpu.memory_space<vmem>>, vector<1x136x128xf32>
    %26 = vector.shape_cast %25 : vector<1x136x128xf32> to vector<136x128xf32>
    %c0_12 = arith.constant 0 : index
    %c0_13 = arith.constant 0 : index
    %27 = vector.load %arg2[%c0_12, %c0_13] : memref<9x128xf32, #tpu.memory_space<vmem>>, vector<9x128xf32>
    %28 = vector.extract_strided_slice %26 {offsets = [0, 0], sizes = [128, 128], strides = [1, 1]} : vector<136x128xf32> to vector<128x128xf32>
    %29 = vector.extract_strided_slice %27 {offsets = [0, 0], sizes = [1, 128], strides = [1, 1]} : vector<9x128xf32> to vector<1x128xf32>
    %30 = vector.broadcast %29 : vector<1x128xf32> to vector<128x128xf32>
    %31 = arith.mulf %28, %30 : vector<128x128xf32>
    %32 = vector.extract_strided_slice %26 {offsets = [1, 0], sizes = [128, 128], strides = [1, 1]} : vector<136x128xf32> to vector<128x128xf32>
    %33 = vector.extract_strided_slice %27 {offsets = [1, 0], sizes = [1, 128], strides = [1, 1]} : vector<9x128xf32> to vector<1x128xf32>
    %34 = vector.broadcast %33 : vector<1x128xf32> to vector<128x128xf32>
    %35 = arith.mulf %32, %34 : vector<128x128xf32>
    %36 = arith.addf %31, %35 : vector<128x128xf32>
    %37 = vector.extract_strided_slice %26 {offsets = [2, 0], sizes = [128, 128], strides = [1, 1]} : vector<136x128xf32> to vector<128x128xf32>
    %38 = vector.extract_strided_slice %27 {offsets = [2, 0], sizes = [1, 128], strides = [1, 1]} : vector<9x128xf32> to vector<1x128xf32>
    %39 = vector.broadcast %38 : vector<1x128xf32> to vector<128x128xf32>
    %40 = arith.mulf %37, %39 : vector<128x128xf32>
    %41 = arith.addf %36, %40 : vector<128x128xf32>
    %42 = vector.extract_strided_slice %26 {offsets = [3, 0], sizes = [128, 128], strides = [1, 1]} : vector<136x128xf32> to vector<128x128xf32>
    %43 = vector.extract_strided_slice %27 {offsets = [3, 0], sizes = [1, 128], strides = [1, 1]} : vector<9x128xf32> to vector<1x128xf32>
    %44 = vector.broadcast %43 : vector<1x128xf32> to vector<128x128xf32>
    %45 = arith.mulf %42, %44 : vector<128x128xf32>
    %46 = arith.addf %41, %45 : vector<128x128xf32>
    %47 = vector.extract_strided_slice %26 {offsets = [4, 0], sizes = [128, 128], strides = [1, 1]} : vector<136x128xf32> to vector<128x128xf32>
    %48 = vector.extract_strided_slice %27 {offsets = [4, 0], sizes = [1, 128], strides = [1, 1]} : vector<9x128xf32> to vector<1x128xf32>
    %49 = vector.broadcast %48 : vector<1x128xf32> to vector<128x128xf32>
    %50 = arith.mulf %47, %49 : vector<128x128xf32>
    %51 = arith.addf %46, %50 : vector<128x128xf32>
    %52 = vector.extract_strided_slice %26 {offsets = [5, 0], sizes = [128, 128], strides = [1, 1]} : vector<136x128xf32> to vector<128x128xf32>
    %53 = vector.extract_strided_slice %27 {offsets = [5, 0], sizes = [1, 128], strides = [1, 1]} : vector<9x128xf32> to vector<1x128xf32>
    %54 = vector.broadcast %53 : vector<1x128xf32> to vector<128x128xf32>
    %55 = arith.mulf %52, %54 : vector<128x128xf32>
    %56 = arith.addf %51, %55 : vector<128x128xf32>
    %57 = vector.extract_strided_slice %26 {offsets = [6, 0], sizes = [128, 128], strides = [1, 1]} : vector<136x128xf32> to vector<128x128xf32>
    %58 = vector.extract_strided_slice %27 {offsets = [6, 0], sizes = [1, 128], strides = [1, 1]} : vector<9x128xf32> to vector<1x128xf32>
    %59 = vector.broadcast %58 : vector<1x128xf32> to vector<128x128xf32>
    %60 = arith.mulf %57, %59 : vector<128x128xf32>
    %61 = arith.addf %56, %60 : vector<128x128xf32>
    %62 = vector.extract_strided_slice %26 {offsets = [7, 0], sizes = [128, 128], strides = [1, 1]} : vector<136x128xf32> to vector<128x128xf32>
    %63 = vector.extract_strided_slice %27 {offsets = [7, 0], sizes = [1, 128], strides = [1, 1]} : vector<9x128xf32> to vector<1x128xf32>
    %64 = vector.broadcast %63 : vector<1x128xf32> to vector<128x128xf32>
    %65 = arith.mulf %62, %64 : vector<128x128xf32>
    %66 = arith.addf %61, %65 : vector<128x128xf32>
    %67 = vector.extract_strided_slice %26 {offsets = [8, 0], sizes = [128, 128], strides = [1, 1]} : vector<136x128xf32> to vector<128x128xf32>
    %68 = vector.extract_strided_slice %27 {offsets = [8, 0], sizes = [1, 128], strides = [1, 1]} : vector<9x128xf32> to vector<1x128xf32>
    %69 = vector.broadcast %68 : vector<1x128xf32> to vector<128x128xf32>
    %70 = arith.mulf %67, %69 : vector<128x128xf32>
    %71 = arith.addf %66, %70 : vector<128x128xf32>
    %c0_14 = arith.constant 0 : index
    %c0_15 = arith.constant 0 : index
    %72 = vector.load %arg3[%c0_14, %c0_15] : memref<128x128xf32, #tpu.memory_space<vmem>>, vector<128x128xf32>
    %cst = arith.constant dense<0.000000e+00> : vector<128x128xf32>
    %73 = tpu.matmul %71, %72, %cst {dimension_numbers = #tpu.dot_dimension_numbers<[1], [0], [0], [1], [0, 0, 1, 1], [], []>} : vector<128x128xf32>, vector<128x128xf32>, vector<128x128xf32> -> vector<128x128xf32>
    %c0_16 = arith.constant 0 : index
    %c0_17 = arith.constant 0 : index
    %74 = vector.load %arg4[%c0_16, %c0_17] : memref<1x128xf32, #tpu.memory_space<vmem>>, vector<1x128xf32>
    %c0_18 = arith.constant 0 : index
    %c0_19 = arith.constant 0 : index
    %75 = vector.load %arg5[%c0_18, %c0_19] : memref<1x128xf32, #tpu.memory_space<vmem>>, vector<1x128xf32>
    %76 = vector.broadcast %74 : vector<1x128xf32> to vector<128x128xf32>
    %77 = arith.subf %73, %76 : vector<128x128xf32>
    %cst_20 = arith.constant 5.000000e-01 : f32
    %78 = vector.broadcast %cst_20 : f32 to vector<128x128xf32>
    %79 = arith.mulf %78, %77 : vector<128x128xf32>
    %80 = math.tanh %79 : vector<128x128xf32>
    %cst_21 = arith.constant 5.000000e-01 : f32
    %81 = vector.broadcast %cst_21 : f32 to vector<128x128xf32>
    %82 = arith.mulf %81, %80 : vector<128x128xf32>
    %cst_22 = arith.constant 5.000000e-01 : f32
    %83 = vector.broadcast %cst_22 : f32 to vector<128x128xf32>
    %84 = arith.addf %82, %83 : vector<128x128xf32>
    %85 = vector.broadcast %75 : vector<1x128xf32> to vector<128x128xf32>
    %86 = arith.mulf %84, %85 : vector<128x128xf32>
    %87 = tpu.iota {dimensions = array<i32: 1>} : vector<1x128xi32>
    %c0_23 = arith.constant 0 : index
    %c0_24 = arith.constant 0 : index
    %88 = vector.load %arg6[%c0_23, %c0_24] : memref<2x128xf32, #tpu.memory_space<vmem>>, vector<1x128xf32>
    %89 = vector.broadcast %88 : vector<1x128xf32> to vector<128x128xf32>
    %90 = arith.mulf %86, %89 : vector<128x128xf32>
    %cst_25 = arith.constant dense<0.000000e+00> : vector<128xf32>
    %91 = vector.multi_reduction <add>, %90, %cst_25 [1] : vector<128x128xf32> to vector<128xf32>
    %92 = vector.shape_cast %91 : vector<128xf32> to vector<128x1xf32>
    %93 = vector.extract_strided_slice %73 {offsets = [0, 1], sizes = [128, 1], strides = [1, 1]} : vector<128x128xf32> to vector<128x1xf32>
    %94 = arith.addf %93, %92 : vector<128x1xf32>
    %95 = vector.extract_strided_slice %74 {offsets = [0, 1], sizes = [1, 1], strides = [1, 1]} : vector<1x128xf32> to vector<1x1xf32>
    %96 = vector.broadcast %95 : vector<1x1xf32> to vector<128x1xf32>
    %97 = arith.subf %94, %96 : vector<128x1xf32>
    %cst_26 = arith.constant 5.000000e-01 : f32
    %98 = vector.broadcast %cst_26 : f32 to vector<128x1xf32>
    %99 = arith.mulf %98, %97 : vector<128x1xf32>
    %100 = math.tanh %99 : vector<128x1xf32>
    %cst_27 = arith.constant 5.000000e-01 : f32
    %101 = vector.broadcast %cst_27 : f32 to vector<128x1xf32>
    %102 = arith.mulf %101, %100 : vector<128x1xf32>
    %cst_28 = arith.constant 5.000000e-01 : f32
    %103 = vector.broadcast %cst_28 : f32 to vector<128x1xf32>
    %104 = arith.addf %102, %103 : vector<128x1xf32>
    %105 = vector.extract_strided_slice %75 {offsets = [0, 1], sizes = [1, 1], strides = [1, 1]} : vector<1x128xf32> to vector<1x1xf32>
    %106 = vector.broadcast %105 : vector<1x1xf32> to vector<128x1xf32>
    %107 = arith.mulf %104, %106 : vector<128x1xf32>
    %c1_i32_29 = arith.constant 1 : i32
    %108 = vector.broadcast %c1_i32_29 : i32 to vector<1x128xi32>
    %109 = arith.cmpi eq, %87, %108 : vector<1x128xi32>
    %110 = vector.shape_cast %109 : vector<1x128xi1> to vector<1x128xi1>
    %111 = vector.broadcast %110 : vector<1x128xi1> to vector<128x128xi1>
    %112 = vector.shape_cast %107 : vector<128x1xf32> to vector<128x1xf32>
    %113 = vector.broadcast %112 : vector<128x1xf32> to vector<128x128xf32>
    %114 = arith.select %111, %113, %86 : vector<128x128xi1>, vector<128x128xf32>
    %c1 = arith.constant 1 : index
    %c0_30 = arith.constant 0 : index
    %115 = vector.load %arg6[%c1, %c0_30] : memref<2x128xf32, #tpu.memory_space<vmem>>, vector<1x128xf32>
    %116 = vector.broadcast %115 : vector<1x128xf32> to vector<128x128xf32>
    %117 = arith.mulf %114, %116 : vector<128x128xf32>
    %cst_31 = arith.constant dense<0.000000e+00> : vector<128xf32>
    %118 = vector.multi_reduction <add>, %117, %cst_31 [1] : vector<128x128xf32> to vector<128xf32>
    %119 = vector.shape_cast %118 : vector<128xf32> to vector<128x1xf32>
    %120 = vector.extract_strided_slice %73 {offsets = [0, 0], sizes = [128, 1], strides = [1, 1]} : vector<128x128xf32> to vector<128x1xf32>
    %121 = arith.addf %120, %119 : vector<128x1xf32>
    %122 = vector.extract_strided_slice %74 {offsets = [0, 0], sizes = [1, 1], strides = [1, 1]} : vector<1x128xf32> to vector<1x1xf32>
    %123 = vector.broadcast %122 : vector<1x1xf32> to vector<128x1xf32>
    %124 = arith.subf %121, %123 : vector<128x1xf32>
    %cst_32 = arith.constant 5.000000e-01 : f32
    %125 = vector.broadcast %cst_32 : f32 to vector<128x1xf32>
    %126 = arith.mulf %125, %124 : vector<128x1xf32>
    %127 = math.tanh %126 : vector<128x1xf32>
    %cst_33 = arith.constant 5.000000e-01 : f32
    %128 = vector.broadcast %cst_33 : f32 to vector<128x1xf32>
    %129 = arith.mulf %128, %127 : vector<128x1xf32>
    %cst_34 = arith.constant 5.000000e-01 : f32
    %130 = vector.broadcast %cst_34 : f32 to vector<128x1xf32>
    %131 = arith.addf %129, %130 : vector<128x1xf32>
    %132 = vector.extract_strided_slice %75 {offsets = [0, 0], sizes = [1, 1], strides = [1, 1]} : vector<1x128xf32> to vector<1x1xf32>
    %133 = vector.broadcast %132 : vector<1x1xf32> to vector<128x1xf32>
    %134 = arith.mulf %131, %133 : vector<128x1xf32>
    %c0_i32_35 = arith.constant 0 : i32
    %135 = vector.broadcast %c0_i32_35 : i32 to vector<1x128xi32>
    %136 = arith.cmpi eq, %87, %135 : vector<1x128xi32>
    %137 = vector.shape_cast %136 : vector<1x128xi1> to vector<1x128xi1>
    %138 = vector.broadcast %137 : vector<1x128xi1> to vector<128x128xi1>
    %139 = vector.shape_cast %134 : vector<128x1xf32> to vector<128x1xf32>
    %140 = vector.broadcast %139 : vector<128x1xf32> to vector<128x128xf32>
    %141 = arith.select %138, %140, %114 : vector<128x128xi1>, vector<128x128xf32>
    %c0_36 = arith.constant 0 : index
    %c0_37 = arith.constant 0 : index
    %142 = vector.load %arg7[%c0_36, %c0_37] : memref<128x128xf32, #tpu.memory_space<vmem>>, vector<128x128xf32>
    tpu.vector_store %arg7[%c0_36, %c0_37], %141 {strides = array<i32>} : memref<128x128xf32, #tpu.memory_space<vmem>>, vector<128x128xf32>,
    return
  }
  func.func @transform_1(%arg0: i32) -> (i32, i32) {
    %c0_i32 = arith.constant 0 : i32
    %c0_i32_0 = arith.constant 0 : i32
    %c0_i32_1 = arith.constant 0 : i32
    return %c0_i32, %c0_i32_0 : i32, i32
  }
  func.func @transform_2(%arg0: i32) -> (i32, i32) {
    %c0_i32 = arith.constant 0 : i32
    %c0_i32_0 = arith.constant 0 : i32
    %c0_i32_1 = arith.constant 0 : i32
    return %c0_i32, %c0_i32_0 : i32, i32
  }
  func.func @transform_3(%arg0: i32) -> (i32, i32) {
    %c0_i32 = arith.constant 0 : i32
    %c0_i32_0 = arith.constant 0 : i32
    %c0_i32_1 = arith.constant 0 : i32
    return %c0_i32, %c0_i32_0 : i32, i32
  }
  func.func @transform_4(%arg0: i32) -> (i32, i32) {
    %c0_i32 = arith.constant 0 : i32
    %c0_i32_0 = arith.constant 0 : i32
    %c0_i32_1 = arith.constant 0 : i32
    return %c0_i32, %c0_i32_0 : i32, i32
  }
  func.func @transform_5(%arg0: i32) -> (i32, i32) {
    %c0_i32 = arith.constant 0 : i32
    %c0_i32_0 = arith.constant 0 : i32
    %c0_i32_1 = arith.constant 0 : i32
    return %c0_i32, %c0_i32_0 : i32, i32
  }
  func.func @transform_6(%arg0: i32) -> (i32, i32) {
    %c0_i32 = arith.constant 0 : i32
    %c0_i32_0 = arith.constant 0 : i32
    return %arg0, %c0_i32 : i32, i32
  }
}

</mosaic_0001>

<llo_original>
// kernel: tpu_custom_call.1
$region0: #{tpu_custom_call.1}
  #allocation0 [shape = 'u32[]', space=smem, size = 0x4, offset = 0x4, fixed_abs, tag = 'smem constant byte address 0x4 - core index']
  #allocation1 [shape = 'u32[144,128]{1,0:T(1,128)}', space=vmem, size = 0x12000, scoped, tag = 'internal scratch']
  #allocation2 [shape = 'f32[2,136,128]{2,1,0:T(8,128)}', space=vmem, size = 0x22000, scoped, tag = 'scratch operand']
  #allocation3 [shape = 's32[2]{0}', space=sflag, size = 0x8, scoped, tag = 'scratch operand']
  #allocation10 [shape = 's32[]', space=sflag, size = 0x4, offset = 0, fixed_abs, tag = 'sflag constant byte address 0x0 - dummy sync flag']
  #allocation11 [shape = 's32[]', space=sflag, size = 0x4, offset = 0, fixed_abs, tag = 'sflag constant byte address 0x0 - dummy sync flag']
  #allocation12 [shape = 'u32[]', space=smem, size = 0x4, offset = 0x44, fixed_abs, tag = 'smem constant byte address 0x44 - assertion arg 0']
  #allocation13 [shape = 'u32[]', space=smem, size = 0x4, offset = 0x48, fixed_abs, tag = 'smem constant byte address 0x48 - assertion arg 1']
  #allocation14 [shape = 's32[]', space=sflag, size = 0x4, offset = 0, fixed_abs, tag = 'sflag constant byte address 0x0 - dummy sync flag']
  #allocation15 [shape = 's32[]', space=sflag, size = 0x4, offset = 0, fixed_abs, tag = 'sflag constant byte address 0x0 - dummy sync flag']
  %s0 = inlined_call_operand.hbm [shape: f32[136,128], index: 0, kind: input, shape index: {}]
  %s1 = inlined_call_operand.hbm [shape: f32[9,128], index: 1, kind: input, shape index: {}]
  %s2 = inlined_call_operand.hbm [shape: f32[128,128], index: 2, kind: input, shape index: {}]
  %s3 = inlined_call_operand.vmem [shape: f32[1,128], index: 3, kind: input, shape index: {}]
  %s4 = inlined_call_operand.vmem [shape: f32[1,128], index: 4, kind: input, shape index: {}]
  %s5 = inlined_call_operand.vmem [shape: f32[2,128], index: 5, kind: input, shape index: {}]
  %s6 = inlined_call_operand.hbm [shape: f32[128,128], index: 6, kind: output, shape index: {}]
  %s7 = sld [smem:[#allocation0]]
  $region54: #{tpu_custom_call.1} parent=0
    _
  %s9 = ssub.s32 1, %s7
  %s10 = scalar_select 0, %s9, %s7
  $region1: #{tpu_custom_call.1} parent=0
    #allocation4 [shape = 'u8[8192]{0}', space=vmem, size = 0x2000, scoped, tag = 'input window, operand 1, single buffered']
    #allocation5 [shape = 's32[1]{0}', space=sflag, size = 0x4, scoped, tag = 'scoped memory for tpu_custom_call.1']
    #allocation6 [shape = 's32[1]{0}', space=sflag, size = 0x4, scoped, tag = 'scoped memory for tpu_custom_call.1']
    #allocation7 [shape = 'u8[65536]{0}', space=vmem, size = 0x10000, scoped, tag = 'input window, operand 2, single buffered']
    #allocation8 [shape = 's32[1]{0}', space=sflag, size = 0x4, scoped, tag = 'scoped memory for tpu_custom_call.1']
    #allocation9 [shape = 'u8[65536]{0}', space=vmem, size = 0x10000, scoped, tag = 'output window, operand 0, single buffered']
    %11 = vsyncpa [#allocation5], 0
    %12 = vsyncpa [#allocation8], 0
    %13 = vsyncpa [#allocation6], 0
    // Predicated region
    $region2: #{tpu_custom_call.1} parent=1 // pred_check
      _
    $region3: #{tpu_custom_call.1} parent=1 // pred_check_branch
      %15 = sbr.rel (0) target = $region5
    $region4: #{tpu_custom_call.1} parent=1 // pred_region
      %s17 = ssub.s32 256, 256
      %18 = vsyncadd [#allocation5], %s17
      %s19 = sshll.u32 [#allocation4], 4
      %s20 = int_to_ptr.vmem [resolvable:$true] %s19
      %25 = dma.hbm_to_vmem [thread:$0]  %s1, 256, %s20, [#allocation5], 128, 128, 8
    $region5: #{tpu_custom_call.1} parent=1 // pred_fallthru
      _
    // Predicated region
    $region6: #{tpu_custom_call.1} parent=1 // pred_check
      _
    $region7: #{tpu_custom_call.1} parent=1 // pred_check_branch
      %27 = sbr.rel (0) target = $region9
    $region8: #{tpu_custom_call.1} parent=1 // pred_region
      %s29 = ssub.s32 2048, 2048
      %30 = vsyncadd [#allocation8], %s29
      %s31 = sshll.u32 [#allocation7], 4
      %s32 = int_to_ptr.vmem [resolvable:$true] %s31
      %37 = dma.hbm_to_vmem [thread:$0]  %s2, 2048, %s32, [#allocation8], 128, 128, 8
    $region9: #{tpu_custom_call.1} parent=1 // pred_fallthru
      _
    // Predicated region
    $region10: #{tpu_custom_call.1} parent=1 // pred_check
      _
    $region11: #{tpu_custom_call.1} parent=1 // pred_check_branch
      %39 = sbr.rel (0) target = $region13
    $region12: #{tpu_custom_call.1} parent=1 // pred_region
      _
    $region13: #{tpu_custom_call.1} parent=1 // pred_fallthru
      _
    // Predicated region
    $region14: #{tpu_custom_call.1} parent=1 // pred_check
      _
    $region15: #{tpu_custom_call.1} parent=1 // pred_check_branch
      %41 = sbr.rel (0) target = $region17
    $region16: #{tpu_custom_call.1} parent=1 // pred_region
      _
    $region17: #{tpu_custom_call.1} parent=1 // pred_fallthru
      _
    // Predicated region
    $region18: #{tpu_custom_call.1} parent=1 // pred_check
      _
    $region19: #{tpu_custom_call.1} parent=1 // pred_check_branch
      %43 = sbr.rel (0) target = $region21
    $region20: #{tpu_custom_call.1} parent=1 // pred_region
      _
    $region21: #{tpu_custom_call.1} parent=1 // pred_fallthru
      _
    // Predicated region
    $region22: #{tpu_custom_call.1} parent=1 // pred_check
      _
    $region23: #{tpu_custom_call.1} parent=1 // pred_check_branch
      %45 = sbr.rel (0) target = $region25
    $region24: #{tpu_custom_call.1} parent=1 // pred_region
      %46 = dma.done [#allocation5], 256
    $region25: #{tpu_custom_call.1} parent=1 // pred_fallthru
      _
    // Predicated region
    $region26: #{tpu_custom_call.1} parent=1 // pred_check
      _
    $region27: #{tpu_custom_call.1} parent=1 // pred_check_branch
      %48 = sbr.rel (0) target = $region29
    $region28: #{tpu_custom_call.1} parent=1 // pred_region
      %49 = dma.done [#allocation8], 2048
    $region29: #{tpu_custom_call.1} parent=1 // pred_fallthru
      _
    %s50 = ssub.s32 0, 0
    %s51 = ssub.s32 0, 0
    %p52 = scmp.ne.s32.totalorder 0, 0
    %p53 = scmp.lt.s32.totalorder 0, 0
    %p54 = pnand %p53, %p52
    %p55 = pneg %p54
    %s56 = sadd.s32 0, 2
    %s57 = scalar_select %p55, %s56, 0
    %p58 = scmp.eq.s32.totalorder 0, 0
    // Predicated region
    $region30: #{tpu_custom_call.1} parent=1 // pred_check
      %p59 = pneg %p58
    $region31: #{tpu_custom_call.1} parent=1 // pred_check_branch
      %61 = sbr.rel (%p59) target = $region33
    $region32: #{tpu_custom_call.1} parent=1 // pred_region
      %s62 = smul.u32 0, 128
      %s63 = smul.addr %s62, 16
      %s64 = scalar_lea.hbm %s0, %s63
      %s65 = smul.u32 %s57, 136
      %s66 = scalar_lea.vmem [#allocation2], %s65
      %s67 = scalar_lea.sflag [#allocation3], %s57
      // Predicated region
      $region34: #{tpu_custom_call.1} parent=32 // pred_check
        _
      $region35: #{tpu_custom_call.1} parent=32 // pred_check_branch
        %69 = sbr.rel target = $region37
      $region36: #{tpu_custom_call.1} parent=32 // pred_region
        %70 = sst [smem:[#allocation12]] [#allocation11]
        %71 = sst [smem:[#allocation13]] [#allocation10]
      $region37: #{tpu_custom_call.1} parent=32 // pred_fallthru
        _
      %73 = shalt.err (0)
      %s75 = sshll.u32 %s66, 4
      %s76 = int_to_ptr.vmem [resolvable:$true] %s75
      %78 = dma.hbm_to_vmem [thread:$0]  %s64, 2176, %s76, %s67
    $region33: #{tpu_custom_call.1} parent=1 // pred_fallthru
      _
    %s79 = sadd.s32 0, 1
    %p80 = scmp.lt.s32.totalorder %s79, 1
    // Predicated region
    $region38: #{tpu_custom_call.1} parent=1 // pred_check
      %p81 = pneg %p80
    $region39: #{tpu_custom_call.1} parent=1 // pred_check_branch
      %83 = sbr.rel (%p81) target = $region41
    $region40: #{tpu_custom_call.1} parent=1 // pred_region
      %p84 = scmp.lt.s32.totalorder %s79, 0
      %s85 = ssub.s32 0, %s79
      %s86 = scalar_select %p84, %s85, %s79
      %s87 = sand.u32 %s86, 1
      %s88 = ssub.s32 0, %s87
      %s89 = scalar_select %p84, %s88, %s87
      %p90 = scmp.ne.s32.totalorder %s89, 0
      %p91 = scmp.lt.s32.totalorder %s89, 0
      %p92 = pnand %p91, %p90
      %p93 = pneg %p92
      %s94 = sadd.s32 %s89, 2
      %s95 = scalar_select %p93, %s94, %s89
      %s96 = smul.u32 %s79, 128
      %s97 = smul.addr %s96, 16
      %s98 = scalar_lea.hbm %s0, %s97
      %s99 = smul.u32 %s95, 136
      %s100 = scalar_lea.vmem [#allocation2], %s99
      %s101 = scalar_lea.sflag [#allocation3], %s95
      // Predicated region
      $region42: #{tpu_custom_call.1} parent=40 // pred_check
        _
      $region43: #{tpu_custom_call.1} parent=40 // pred_check_branch
        %103 = sbr.rel target = $region45
      $region44: #{tpu_custom_call.1} parent=40 // pred_region
        %104 = sst [smem:[#allocation12]] [#allocation15]
        %105 = sst [smem:[#allocation13]] [#allocation14]
      $region45: #{tpu_custom_call.1} parent=40 // pred_fallthru
        _
      %107 = shalt.err (0)
      %s109 = sshll.u32 %s100, 4
      %s110 = int_to_ptr.vmem [resolvable:$true] %s109
      %112 = dma.hbm_to_vmem [thread:$0]  %s98, 2176, %s110, %s101
    $region41: #{tpu_custom_call.1} parent=1 // pred_fallthru
      _
    %s113 = smul.u32 0, 128
    %s114 = smul.u32 %s57, 136
    %s115 = scalar_lea.vmem [#allocation2], %s114
    %s116 = scalar_lea.sflag [#allocation3], %s57
    %s117 = smul.u32 136, 1
    %s118 = sshll.u32 %s117, 4
    %119 = dma.done %s116, %s118
    %v120 = vld [vmem:[%s115] sm:$0xff]
    %v121 = vld [vmem:[%s115 + $0x8] sm:$0xff]
    %v122 = vld [vmem:[%s115 + $0x10] sm:$0xff]
    %v123 = vld [vmem:[%s115 + $0x18] sm:$0xff]
    %v124 = vld [vmem:[%s115 + $0x20] sm:$0xff]
    %v125 = vld [vmem:[%s115 + $0x28] sm:$0xff]
    %v126 = vld [vmem:[%s115 + $0x30] sm:$0xff]
    %v127 = vld [vmem:[%s115 + $0x38] sm:$0xff]
    %v128 = vld [vmem:[%s115 + $0x40] sm:$0xff]
    %v129 = vld [vmem:[%s115 + $0x48] sm:$0xff]
    %v130 = vld [vmem:[%s115 + $0x50] sm:$0xff]
    %v131 = vld [vmem:[%s115 + $0x58] sm:$0xff]
    %v132 = vld [vmem:[%s115 + $0x60] sm:$0xff]
    %v133 = vld [vmem:[%s115 + $0x68] sm:$0xff]
    %v134 = vld [vmem:[%s115 + $0x70] sm:$0xff]
    %v135 = vld [vmem:[%s115 + $0x78] sm:$0xff]
    %v136 = vld [vmem:[%s115 + $0x80] sm:$0xff]
    %v137 = vld [vmem:[#allocation4] sm:$0xff]
    %v138 = vld [vmem:[#allocation4 + $0x8] sm:$0x1]
    %v139 = vlaneseq
    %v140 = vshrl.u32 %v139, 7
    %v141 = vsub.s32 0, %v140
    %v142 = vrot.slane %v137, %v141
    %v143 = vmul.f32 %v120, %v142
    %v144 = vmul.f32 %v121, %v142
    %v145 = vmul.f32 %v122, %v142
    %v146 = vmul.f32 %v123, %v142
    %v147 = vmul.f32 %v124, %v142
    %v148 = vmul.f32 %v125, %v142
    %v149 = vmul.f32 %v126, %v142
    %v150 = vmul.f32 %v127, %v142
    %v151 = vmul.f32 %v128, %v142
    %v152 = vmul.f32 %v129, %v142
    %v153 = vmul.f32 %v130, %v142
    %v154 = vmul.f32 %v131, %v142
    %v155 = vmul.f32 %v132, %v142
    %v156 = vmul.f32 %v133, %v142
    %v157 = vmul.f32 %v134, %v142
    %v158 = vmul.f32 %v135, %v142
    %v159 = vlaneseq
    %v160 = vshrl.u32 %v159, 7
    %v161 = vsub.s32 1, %v160
    %v162 = vrot.slane %v137, %v161
    %v163 = vmul.f32 %v120, %v162
    %v164 = vmul.f32 %v121, %v162
    %v165 = vmul.f32 %v122, %v162
    %v166 = vmul.f32 %v123, %v162
    %v167 = vmul.f32 %v124, %v162
    %v168 = vmul.f32 %v125, %v162
    %v169 = vmul.f32 %v126, %v162
    %v170 = vmul.f32 %v127, %v162
    %v171 = vmul.f32 %v128, %v162
    %v172 = vmul.f32 %v129, %v162
    %v173 = vmul.f32 %v130, %v162
    %v174 = vmul.f32 %v131, %v162
    %v175 = vmul.f32 %v132, %v162
    %v176 = vmul.f32 %v133, %v162
    %v177 = vmul.f32 %v134, %v162
    %v178 = vmul.f32 %v135, %v162
    %v179 = vmul.f32 %v136, %v162
    %vm197 = vcmask 1046528
    %v198 = vrot.slane %v163, 1
    %v199 = vrot.slane %v164, 1
    %v200 = vsel %vm197, %v198, %v199
    %v201 = vrot.slane %v165, 1
    %v202 = vsel %vm197, %v199, %v201
    %v203 = vrot.slane %v166, 1
    %v204 = vsel %vm197, %v201, %v203
    %v205 = vrot.slane %v167, 1
    %v206 = vsel %vm197, %v203, %v205
    %v207 = vrot.slane %v168, 1
    %v208 = vsel %vm197, %v205, %v207
    %v209 = vrot.slane %v169, 1
    %v210 = vsel %vm197, %v207, %v209
    %v211 = vrot.slane %v170, 1
    %v212 = vsel %vm197, %v209, %v211
    %v213 = vrot.slane %v171, 1
    %v214 = vsel %vm197, %v211, %v213
    %v215 = vrot.slane %v172, 1
    %v216 = vsel %vm197, %v213, %v215
    %v217 = vrot.slane %v173, 1
    %v218 = vsel %vm197, %v215, %v217
    %v219 = vrot.slane %v174, 1
    %v220 = vsel %vm197, %v217, %v219
    %v221 = vrot.slane %v175, 1
    %v222 = vsel %vm197, %v219, %v221
    %v223 = vrot.slane %v176, 1
    %v224 = vsel %vm197, %v221, %v223
    %v225 = vrot.slane %v177, 1
    %v226 = vsel %vm197, %v223, %v225
    %v227 = vrot.slane %v178, 1
    %v228 = vsel %vm197, %v225, %v227
    %v229 = vrot.slane %v179, 1
    %v230 = vsel %vm197, %v227, %v229
    %v247 = vadd.f32 %v143, %v200
    %v248 = vadd.f32 %v144, %v202
    %v249 = vadd.f32 %v145, %v204
    %v250 = vadd.f32 %v146, %v206
    %v251 = vadd.f32 %v147, %v208
    %v252 = vadd.f32 %v148, %v210
    %v253 = vadd.f32 %v149, %v212
    %v254 = vadd.f32 %v150, %v214
    %v255 = vadd.f32 %v151, %v216
    %v256 = vadd.f32 %v152, %v218
    %v257 = vadd.f32 %v153, %v220
    %v258 = vadd.f32 %v154, %v222
    %v259 = vadd.f32 %v155, %v224
    %v260 = vadd.f32 %v156, %v226
    %v261 = vadd.f32 %v157, %v228
    %v262 = vadd.f32 %v158, %v230
    %v263 = vlaneseq
    %v264 = vshrl.u32 %v263, 7
    %v265 = vsub.s32 2, %v264
    %v266 = vrot.slane %v137, %v265
    %v267 = vmul.f32 %v120, %v266
    %v268 = vmul.f32 %v121, %v266
    %v269 = vmul.f32 %v122, %v266
    %v270 = vmul.f32 %v123, %v266
    %v271 = vmul.f32 %v124, %v266
    %v272 = vmul.f32 %v125, %v266
    %v273 = vmul.f32 %v126, %v266
    %v274 = vmul.f32 %v127, %v266
    %v275 = vmul.f32 %v128, %v266
    %v276 = vmul.f32 %v129, %v266
    %v277 = vmul.f32 %v130, %v266
    %v278 = vmul.f32 %v131, %v266
    %v279 = vmul.f32 %v132, %v266
    %v280 = vmul.f32 %v133, %v266
    %v281 = vmul.f32 %v134, %v266
    %v282 = vmul.f32 %v135, %v266
    %v283 = vmul.f32 %v136, %v266
    %vm301 = vcmask 1045504
    %v302 = vrot.slane %v267, 2
    %v303 = vrot.slane %v268, 2
    %v304 = vsel %vm301, %v302, %v303
    %v305 = vrot.slane %v269, 2
    %v306 = vsel %vm301, %v303, %v305
    %v307 = vrot.slane %v270, 2
    %v308 = vsel %vm301, %v305, %v307
    %v309 = vrot.slane %v271, 2
    %v310 = vsel %vm301, %v307, %v309
    %v311 = vrot.slane %v272, 2
    %v312 = vsel %vm301, %v309, %v311
    %v313 = vrot.slane %v273, 2
    %v314 = vsel %vm301, %v311, %v313
    %v315 = vrot.slane %v274, 2
    %v316 = vsel %vm301, %v313, %v315
    %v317 = vrot.slane %v275, 2
    %v318 = vsel %vm301, %v315, %v317
    %v319 = vrot.slane %v276, 2
    %v320 = vsel %vm301, %v317, %v319
    %v321 = vrot.slane %v277, 2
    %v322 = vsel %vm301, %v319, %v321
    %v323 = vrot.slane %v278, 2
    %v324 = vsel %vm301, %v321, %v323
    %v325 = vrot.slane %v279, 2
    %v326 = vsel %vm301, %v323, %v325
    %v327 = vrot.slane %v280, 2
    %v328 = vsel %vm301, %v325, %v327
    %v329 = vrot.slane %v281, 2
    %v330 = vsel %vm301, %v327, %v329
    %v331 = vrot.slane %v282, 2
    %v332 = vsel %vm301, %v329, %v331
    %v333 = vrot.slane %v283, 2
    %v334 = vsel %vm301, %v331, %v333
    %v351 = vadd.f32 %v247, %v304
    %v352 = vadd.f32 %v248, %v306
    %v353 = vadd.f32 %v249, %v308
    %v354 = vadd.f32 %v250, %v310
    %v355 = vadd.f32 %v251, %v312
    %v356 = vadd.f32 %v252, %v314
    %v357 = vadd.f32 %v253, %v316
    %v358 = vadd.f32 %v254, %v318
    %v359 = vadd.f32 %v255, %v320
    %v360 = vadd.f32 %v256, %v322
    %v361 = vadd.f32 %v257, %v324
    %v362 = vadd.f32 %v258, %v326
    %v363 = vadd.f32 %v259, %v328
    %v364 = vadd.f32 %v260, %v330
    %v365 = vadd.f32 %v261, %v332
    %v366 = vadd.f32 %v262, %v334
    %v367 = vlaneseq
    %v368 = vshrl.u32 %v367, 7
    %v369 = vsub.s32 3, %v368
    %v370 = vrot.slane %v137, %v369
    %v371 = vmul.f32 %v120, %v370
    %v372 = vmul.f32 %v121, %v370
    %v373 = vmul.f32 %v122, %v370
    %v374 = vmul.f32 %v123, %v370
    %v375 = vmul.f32 %v124, %v370
    %v376 = vmul.f32 %v125, %v370
    %v377 = vmul.f32 %v126, %v370
    %v378 = vmul.f32 %v127, %v370
    %v379 = vmul.f32 %v128, %v370
    %v380 = vmul.f32 %v129, %v370
    %v381 = vmul.f32 %v130, %v370
    %v382 = vmul.f32 %v131, %v370
    %v383 = vmul.f32 %v132, %v370
    %v384 = vmul.f32 %v133, %v370
    %v385 = vmul.f32 %v134, %v370
    %v386 = vmul.f32 %v135, %v370
    %v387 = vmul.f32 %v136, %v370
    %vm405 = vcmask 1044480
    %v406 = vrot.slane %v371, 3
    %v407 = vrot.slane %v372, 3
    %v408 = vsel %vm405, %v406, %v407
    %v409 = vrot.slane %v373, 3
    %v410 = vsel %vm405, %v407, %v409
    %v411 = vrot.slane %v374, 3
    %v412 = vsel %vm405, %v409, %v411
    %v413 = vrot.slane %v375, 3
    %v414 = vsel %vm405, %v411, %v413
    %v415 = vrot.slane %v376, 3
    %v416 = vsel %vm405, %v413, %v415
    %v417 = vrot.slane %v377, 3
    %v418 = vsel %vm405, %v415, %v417
    %v419 = vrot.slane %v378, 3
    %v420 = vsel %vm405, %v417, %v419
    %v421 = vrot.slane %v379, 3
    %v422 = vsel %vm405, %v419, %v421
    %v423 = vrot.slane %v380, 3
    %v424 = vsel %vm405, %v421, %v423
    %v425 = vrot.slane %v381, 3
    %v426 = vsel %vm405, %v423, %v425
    %v427 = vrot.slane %v382, 3
    %v428 = vsel %vm405, %v425, %v427
    %v429 = vrot.slane %v383, 3
    %v430 = vsel %vm405, %v427, %v429
    %v431 = vrot.slane %v384, 3
    %v432 = vsel %vm405, %v429, %v431
    %v433 = vrot.slane %v385, 3
    %v434 = vsel %vm405, %v431, %v433
    %v435 = vrot.slane %v386, 3
    %v436 = vsel %vm405, %v433, %v435
    %v437 = vrot.slane %v387, 3
    %v438 = vsel %vm405, %v435, %v437
    %v455 = vadd.f32 %v351, %v408
    %v456 = vadd.f32 %v352, %v410
    %v457 = vadd.f32 %v353, %v412
    %v458 = vadd.f32 %v354, %v414
    %v459 = vadd.f32 %v355, %v416
    %v460 = vadd.f32 %v356, %v418
    %v461 = vadd.f32 %v357, %v420
    %v462 = vadd.f32 %v358, %v422
    %v463 = vadd.f32 %v359, %v424
    %v464 = vadd.f32 %v360, %v426
    %v465 = vadd.f32 %v361, %v428
    %v466 = vadd.f32 %v362, %v430
    %v467 = vadd.f32 %v363, %v432
    %v468 = vadd.f32 %v364, %v434
    %v469 = vadd.f32 %v365, %v436
    %v470 = vadd.f32 %v366, %v438
    %v471 = vlaneseq
    %v472 = vshrl.u32 %v471, 7
    %v473 = vsub.s32 4, %v472
    %v474 = vrot.slane %v137, %v473
    %v475 = vmul.f32 %v120, %v474
    %v476 = vmul.f32 %v121, %v474
    %v477 = vmul.f32 %v122, %v474
    %v478 = vmul.f32 %v123, %v474
    %v479 = vmul.f32 %v124, %v474
    %v480 = vmul.f32 %v125, %v474
    %v481 = vmul.f32 %v126, %v474
    %v482 = vmul.f32 %v127, %v474
    %v483 = vmul.f32 %v128, %v474
    %v484 = vmul.f32 %v129, %v474
    %v485 = vmul.f32 %v130, %v474
    %v486 = vmul.f32 %v131, %v474
    %v487 = vmul.f32 %v132, %v474
    %v488 = vmul.f32 %v133, %v474
    %v489 = vmul.f32 %v134, %v474
    %v490 = vmul.f32 %v135, %v474
    %v491 = vmul.f32 %v136, %v474
    %vm509 = vcmask 1043456
    %v510 = vrot.slane %v475, 4
    %v511 = vrot.slane %v476, 4
    %v512 = vsel %vm509, %v510, %v511
    %v513 = vrot.slane %v477, 4
    %v514 = vsel %vm509, %v511, %v513
    %v515 = vrot.slane %v478, 4
    %v516 = vsel %vm509, %v513, %v515
    %v517 = vrot.slane %v479, 4
    %v518 = vsel %vm509, %v515, %v517
    %v519 = vrot.slane %v480, 4
    %v520 = vsel %vm509, %v517, %v519
    %v521 = vrot.slane %v481, 4
    %v522 = vsel %vm509, %v519, %v521
    %v523 = vrot.slane %v482, 4
    %v524 = vsel %vm509, %v521, %v523
    %v525 = vrot.slane %v483, 4
    %v526 = vsel %vm509, %v523, %v525
    %v527 = vrot.slane %v484, 4
    %v528 = vsel %vm509, %v525, %v527
    %v529 = vrot.slane %v485, 4
    %v530 = vsel %vm509, %v527, %v529
    %v531 = vrot.slane %v486, 4
    %v532 = vsel %vm509, %v529, %v531
    %v533 = vrot.slane %v487, 4
    %v534 = vsel %vm509, %v531, %v533
    %v535 = vrot.slane %v488, 4
    %v536 = vsel %vm509, %v533, %v535
    %v537 = vrot.slane %v489, 4
    %v538 = vsel %vm509, %v535, %v537
    %v539 = vrot.slane %v490, 4
    %v540 = vsel %vm509, %v537, %v539
    %v541 = vrot.slane %v491, 4
    %v542 = vsel %vm509, %v539, %v541
    %v559 = vadd.f32 %v455, %v512
    %v560 = vadd.f32 %v456, %v514
    %v561 = vadd.f32 %v457, %v516
    %v562 = vadd.f32 %v458, %v518
    %v563 = vadd.f32 %v459, %v520
    %v564 = vadd.f32 %v460, %v522
    %v565 = vadd.f32 %v461, %v524
    %v566 = vadd.f32 %v462, %v526
    %v567 = vadd.f32 %v463, %v528
    %v568 = vadd.f32 %v464, %v530
    %v569 = vadd.f32 %v465, %v532
    %v570 = vadd.f32 %v466, %v534
    %v571 = vadd.f32 %v467, %v536
    %v572 = vadd.f32 %v468, %v538
    %v573 = vadd.f32 %v469, %v540
    %v574 = vadd.f32 %v470, %v542
    %v575 = vlaneseq
    %v576 = vshrl.u32 %v575, 7
    %v577 = vsub.s32 5, %v576
    %v578 = vrot.slane %v137, %v577
    %v579 = vmul.f32 %v120, %v578
    %v580 = vmul.f32 %v121, %v578
    %v581 = vmul.f32 %v122, %v578
    %v582 = vmul.f32 %v123, %v578
    %v583 = vmul.f32 %v124, %v578
    %v584 = vmul.f32 %v125, %v578
    %v585 = vmul.f32 %v126, %v578
    %v586 = vmul.f32 %v127, %v578
    %v587 = vmul.f32 %v128, %v578
    %v588 = vmul.f32 %v129, %v578
    %v589 = vmul.f32 %v130, %v578
    %v590 = vmul.f32 %v131, %v578
    %v591 = vmul.f32 %v132, %v578
    %v592 = vmul.f32 %v133, %v578
    %v593 = vmul.f32 %v134, %v578
    %v594 = vmul.f32 %v135, %v578
    %v595 = vmul.f32 %v136, %v578
    %vm613 = vcmask 1042432
    %v614 = vrot.slane %v579, 5
    %v615 = vrot.slane %v580, 5
    %v616 = vsel %vm613, %v614, %v615
    %v617 = vrot.slane %v581, 5
    %v618 = vsel %vm613, %v615, %v617
    %v619 = vrot.slane %v582, 5
    %v620 = vsel %vm613, %v617, %v619
    %v621 = vrot.slane %v583, 5
    %v622 = vsel %vm613, %v619, %v621
    %v623 = vrot.slane %v584, 5
    %v624 = vsel %vm613, %v621, %v623
    %v625 = vrot.slane %v585, 5
    %v626 = vsel %vm613, %v623, %v625
    %v627 = vrot.slane %v586, 5
    %v628 = vsel %vm613, %v625, %v627
    %v629 = vrot.slane %v587, 5
    %v630 = vsel %vm613, %v627, %v629
    %v631 = vrot.slane %v588, 5
    %v632 = vsel %vm613, %v629, %v631
    %v633 = vrot.slane %v589, 5
    %v634 = vsel %vm613, %v631, %v633
    %v635 = vrot.slane %v590, 5
    %v636 = vsel %vm613, %v633, %v635
    %v637 = vrot.slane %v591, 5
    %v638 = vsel %vm613, %v635, %v637
    %v639 = vrot.slane %v592, 5
    %v640 = vsel %vm613, %v637, %v639
    %v641 = vrot.slane %v593, 5
    %v642 = vsel %vm613, %v639, %v641
    %v643 = vrot.slane %v594, 5
    %v644 = vsel %vm613, %v641, %v643
    %v645 = vrot.slane %v595, 5
    %v646 = vsel %vm613, %v643, %v645
    %v663 = vadd.f32 %v559, %v616
    %v664 = vadd.f32 %v560, %v618
    %v665 = vadd.f32 %v561, %v620
    %v666 = vadd.f32 %v562, %v622
    %v667 = vadd.f32 %v563, %v624
    %v668 = vadd.f32 %v564, %v626
    %v669 = vadd.f32 %v565, %v628
    %v670 = vadd.f32 %v566, %v630
    %v671 = vadd.f32 %v567, %v632
    %v672 = vadd.f32 %v568, %v634
    %v673 = vadd.f32 %v569, %v636
    %v674 = vadd.f32 %v570, %v638
    %v675 = vadd.f32 %v571, %v640
    %v676 = vadd.f32 %v572, %v642
    %v677 = vadd.f32 %v573, %v644
    %v678 = vadd.f32 %v574, %v646
    %v679 = vlaneseq
    %v680 = vshrl.u32 %v679, 7
    %v681 = vsub.s32 6, %v680
    %v682 = vrot.slane %v137, %v681
    %v683 = vmul.f32 %v120, %v682
    %v684 = vmul.f32 %v121, %v682
    %v685 = vmul.f32 %v122, %v682
    %v686 = vmul.f32 %v123, %v682
    %v687 = vmul.f32 %v124, %v682
    %v688 = vmul.f32 %v125, %v682
    %v689 = vmul.f32 %v126, %v682
    %v690 = vmul.f32 %v127, %v682
    %v691 = vmul.f32 %v128, %v682
    %v692 = vmul.f32 %v129, %v682
    %v693 = vmul.f32 %v130, %v682
    %v694 = vmul.f32 %v131, %v682
    %v695 = vmul.f32 %v132, %v682
    %v696 = vmul.f32 %v133, %v682
    %v697 = vmul.f32 %v134, %v682
    %v698 = vmul.f32 %v135, %v682
    %v699 = vmul.f32 %v136, %v682
    %vm717 = vcmask 1041408
    %v718 = vrot.slane %v683, 6
    %v719 = vrot.slane %v684, 6
    %v720 = vsel %vm717, %v718, %v719
    %v721 = vrot.slane %v685, 6
    %v722 = vsel %vm717, %v719, %v721
    %v723 = vrot.slane %v686, 6
    %v724 = vsel %vm717, %v721, %v723
    %v725 = vrot.slane %v687, 6
    %v726 = vsel %vm717, %v723, %v725
    %v727 = vrot.slane %v688, 6
    %v728 = vsel %vm717, %v725, %v727
    %v729 = vrot.slane %v689, 6
    %v730 = vsel %vm717, %v727, %v729
    %v731 = vrot.slane %v690, 6
    %v732 = vsel %vm717, %v729, %v731
    %v733 = vrot.slane %v691, 6
    %v734 = vsel %vm717, %v731, %v733
    %v735 = vrot.slane %v692, 6
    %v736 = vsel %vm717, %v733, %v735
    %v737 = vrot.slane %v693, 6
    %v738 = vsel %vm717, %v735, %v737
    %v739 = vrot.slane %v694, 6
    %v740 = vsel %vm717, %v737, %v739
    %v741 = vrot.slane %v695, 6
    %v742 = vsel %vm717, %v739, %v741
    %v743 = vrot.slane %v696, 6
    %v744 = vsel %vm717, %v741, %v743
    %v745 = vrot.slane %v697, 6
    %v746 = vsel %vm717, %v743, %v745
    %v747 = vrot.slane %v698, 6
    %v748 = vsel %vm717, %v745, %v747
    %v749 = vrot.slane %v699, 6
    %v750 = vsel %vm717, %v747, %v749
    %v767 = vadd.f32 %v663, %v720
    %v768 = vadd.f32 %v664, %v722
    %v769 = vadd.f32 %v665, %v724
    %v770 = vadd.f32 %v666, %v726
    %v771 = vadd.f32 %v667, %v728
    %v772 = vadd.f32 %v668, %v730
    %v773 = vadd.f32 %v669, %v732
    %v774 = vadd.f32 %v670, %v734
    %v775 = vadd.f32 %v671, %v736
    %v776 = vadd.f32 %v672, %v738
    %v777 = vadd.f32 %v673, %v740
    %v778 = vadd.f32 %v674, %v742
    %v779 = vadd.f32 %v675, %v744
    %v780 = vadd.f32 %v676, %v746
    %v781 = vadd.f32 %v677, %v748
    %v782 = vadd.f32 %v678, %v750
    %v783 = vlaneseq
    %v784 = vshrl.u32 %v783, 7
    %v785 = vsub.s32 7, %v784
    %v786 = vrot.slane %v137, %v785
    %v787 = vmul.f32 %v120, %v786
    %v788 = vmul.f32 %v121, %v786
    %v789 = vmul.f32 %v122, %v786
    %v790 = vmul.f32 %v123, %v786
    %v791 = vmul.f32 %v124, %v786
    %v792 = vmul.f32 %v125, %v786
    %v793 = vmul.f32 %v126, %v786
    %v794 = vmul.f32 %v127, %v786
    %v795 = vmul.f32 %v128, %v786
    %v796 = vmul.f32 %v129, %v786
    %v797 = vmul.f32 %v130, %v786
    %v798 = vmul.f32 %v131, %v786
    %v799 = vmul.f32 %v132, %v786
    %v800 = vmul.f32 %v133, %v786
    %v801 = vmul.f32 %v134, %v786
    %v802 = vmul.f32 %v135, %v786
    %v803 = vmul.f32 %v136, %v786
    %vm821 = vcmask 1040384
    %v822 = vrot.slane %v787, 7
    %v823 = vrot.slane %v788, 7
    %v824 = vsel %vm821, %v822, %v823
    %v825 = vrot.slane %v789, 7
    %v826 = vsel %vm821, %v823, %v825
    %v827 = vrot.slane %v790, 7
    %v828 = vsel %vm821, %v825, %v827
    %v829 = vrot.slane %v791, 7
    %v830 = vsel %vm821, %v827, %v829
    %v831 = vrot.slane %v792, 7
    %v832 = vsel %vm821, %v829, %v831
    %v833 = vrot.slane %v793, 7
    %v834 = vsel %vm821, %v831, %v833
    %v835 = vrot.slane %v794, 7
    %v836 = vsel %vm821, %v833, %v835
    %v837 = vrot.slane %v795, 7
    %v838 = vsel %vm821, %v835, %v837
    %v839 = vrot.slane %v796, 7
    %v840 = vsel %vm821, %v837, %v839
    %v841 = vrot.slane %v797, 7
    %v842 = vsel %vm821, %v839, %v841
    %v843 = vrot.slane %v798, 7
    %v844 = vsel %vm821, %v841, %v843
    %v845 = vrot.slane %v799, 7
    %v846 = vsel %vm821, %v843, %v845
    %v847 = vrot.slane %v800, 7
    %v848 = vsel %vm821, %v845, %v847
    %v849 = vrot.slane %v801, 7
    %v850 = vsel %vm821, %v847, %v849
    %v851 = vrot.slane %v802, 7
    %v852 = vsel %vm821, %v849, %v851
    %v853 = vrot.slane %v803, 7
    %v854 = vsel %vm821, %v851, %v853
    %v871 = vadd.f32 %v767, %v824
    %v872 = vadd.f32 %v768, %v826
    %v873 = vadd.f32 %v769, %v828
    %v874 = vadd.f32 %v770, %v830
    %v875 = vadd.f32 %v771, %v832
    %v876 = vadd.f32 %v772, %v834
    %v877 = vadd.f32 %v773, %v836
    %v878 = vadd.f32 %v774, %v838
    %v879 = vadd.f32 %v775, %v840
    %v880 = vadd.f32 %v776, %v842
    %v881 = vadd.f32 %v777, %v844
    %v882 = vadd.f32 %v778, %v846
    %v883 = vadd.f32 %v779, %v848
    %v884 = vadd.f32 %v780, %v850
    %v885 = vadd.f32 %v781, %v852
    %v886 = vadd.f32 %v782, %v854
    %v887 = vlaneseq
    %v888 = vshrl.u32 %v887, 7
    %v889 = vsub.s32 0, %v888
    %v890 = vrot.slane %v138, %v889
    %v891 = vmul.f32 %v121, %v890
    %v892 = vmul.f32 %v122, %v890
    %v893 = vmul.f32 %v123, %v890
    %v894 = vmul.f32 %v124, %v890
    %v895 = vmul.f32 %v125, %v890
    %v896 = vmul.f32 %v126, %v890
    %v897 = vmul.f32 %v127, %v890
    %v898 = vmul.f32 %v128, %v890
    %v899 = vmul.f32 %v129, %v890
    %v900 = vmul.f32 %v130, %v890
    %v901 = vmul.f32 %v131, %v890
    %v902 = vmul.f32 %v132, %v890
    %v903 = vmul.f32 %v133, %v890
    %v904 = vmul.f32 %v134, %v890
    %v905 = vmul.f32 %v135, %v890
    %v906 = vmul.f32 %v136, %v890
    %v907 = vadd.f32 %v871, %v891
    %v908 = vadd.f32 %v872, %v892
    %v909 = vadd.f32 %v873, %v893
    %v910 = vadd.f32 %v874, %v894
    %v911 = vadd.f32 %v875, %v895
    %v912 = vadd.f32 %v876, %v896
    %v913 = vadd.f32 %v877, %v897
    %v914 = vadd.f32 %v878, %v898
    %v915 = vadd.f32 %v879, %v899
    %v916 = vadd.f32 %v880, %v900
    %v917 = vadd.f32 %v881, %v901
    %v918 = vadd.f32 %v882, %v902
    %v919 = vadd.f32 %v883, %v903
    %v920 = vadd.f32 %v884, %v904
    %v921 = vadd.f32 %v885, %v905
    %v922 = vadd.f32 %v886, %v906
    %v923 = vld [vmem:[#allocation7] sm:$0xff]
    %v924 = vld [vmem:[#allocation7 + $0x8] sm:$0xff]
    %v925 = vld [vmem:[#allocation7 + $0x10] sm:$0xff]
    %v926 = vld [vmem:[#allocation7 + $0x18] sm:$0xff]
    %v927 = vld [vmem:[#allocation7 + $0x20] sm:$0xff]
    %v928 = vld [vmem:[#allocation7 + $0x28] sm:$0xff]
    %v929 = vld [vmem:[#allocation7 + $0x30] sm:$0xff]
    %v930 = vld [vmem:[#allocation7 + $0x38] sm:$0xff]
    %v931 = vld [vmem:[#allocation7 + $0x40] sm:$0xff]
    %v932 = vld [vmem:[#allocation7 + $0x48] sm:$0xff]
    %v933 = vld [vmem:[#allocation7 + $0x50] sm:$0xff]
    %v934 = vld [vmem:[#allocation7 + $0x58] sm:$0xff]
    %v935 = vld [vmem:[#allocation7 + $0x60] sm:$0xff]
    %v936 = vld [vmem:[#allocation7 + $0x68] sm:$0xff]
    %v937 = vld [vmem:[#allocation7 + $0x70] sm:$0xff]
    %v938 = vld [vmem:[#allocation7 + $0x78] sm:$0xff]
    %939 = vmatprep.subr.mxu0 0.0
    %940 = vmatpush1.msra.mxu0 %v938
    %941 = vmatprep.subr.mxu0 0.0
    %942 = vmatpush1.msra.mxu0 %v937
    %943 = vmatprep.subr.mxu0 0.0
    %944 = vmatpush1.msra.mxu0 %v936
    %945 = vmatprep.subr.mxu0 0.0
    %946 = vmatpush1.msra.mxu0 %v935
    %947 = vmatprep.subr.mxu0 0.0
    %948 = vmatpush1.msra.mxu0 %v934
    %949 = vmatprep.subr.mxu0 0.0
    %950 = vmatpush1.msra.mxu0 %v933
    %951 = vmatprep.subr.mxu0 0.0
    %952 = vmatpush1.msra.mxu0 %v932
    %953 = vmatprep.subr.mxu0 0.0
    %954 = vmatpush1.msra.mxu0 %v931
    %955 = vmatprep.subr.mxu0 0.0
    %956 = vmatpush1.msra.mxu0 %v930
    %957 = vmatprep.subr.mxu0 0.0
    %958 = vmatpush1.msra.mxu0 %v929
    %959 = vmatprep.subr.mxu0 0.0
    %960 = vmatpush1.msra.mxu0 %v928
    %961 = vmatprep.subr.mxu0 0.0
    %962 = vmatpush1.msra.mxu0 %v927
    %963 = vmatprep.subr.mxu0 0.0
    %964 = vmatpush1.msra.mxu0 %v926
    %965 = vmatprep.subr.mxu0 0.0
    %966 = vmatpush1.msra.mxu0 %v925
    %967 = vmatprep.subr.mxu0 0.0
    %968 = vmatpush1.msra.mxu0 %v924
    %969 = vmatprep.subr.mxu0 0.0
    %970 = vmatpush1.msra.mxu0 %v923
    %971 = vmatprep.subr.mxu0 0.0
    %972 = vmatpush2.msra.mxu0 0.0
    %973 = vmatprep.subr.mxu0 0.0
    %974 = vmatpush2.msra.mxu0 0.0
    %975 = vmatprep.subr.mxu0 0.0
    %976 = vmatpush2.msra.mxu0 0.0
    %977 = vmatprep.subr.mxu0 0.0
    %978 = vmatpush2.msra.mxu0 0.0
    %979 = vmatprep.subr.mxu0 0.0
    %980 = vmatpush2.msra.mxu0 0.0
    %981 = vmatprep.subr.mxu0 0.0
    %982 = vmatpush2.msra.mxu0 0.0
    %983 = vmatprep.subr.mxu0 0.0
    %984 = vmatpush2.msra.mxu0 0.0
    %985 = vmatprep.subr.mxu0 0.0
    %986 = vmatpush2.msra.mxu0 0.0
    %987 = vmatprep.subr.mxu0 0.0
    %988 = vmatpush2.msra.mxu0 0.0
    %989 = vmatprep.subr.mxu0 0.0
    %990 = vmatpush2.msra.mxu0 0.0
    %991 = vmatprep.subr.mxu0 0.0
    %992 = vmatpush2.msra.mxu0 0.0
    %993 = vmatprep.subr.mxu0 0.0
    %994 = vmatpush2.msra.mxu0 0.0
    %995 = vmatprep.subr.mxu0 0.0
    %996 = vmatpush2.msra.mxu0 0.0
    %997 = vmatprep.subr.mxu0 0.0
    %998 = vmatpush2.msra.mxu0 0.0
    %999 = vmatprep.subr.mxu0 0.0
    %1000 = vmatpush2.msra.mxu0 0.0
    %1001 = vmatprep.subr.mxu0 0.0
    %1002 = vmatpush2.msra.mxu0 0.0
    %1003 = vmatprep.mubr.f32.mxu0 0.0
    %1004 = vmatmul.mubr.f32.gmra.mxu0 %v907
    %v1005 = vpop.f32.mrf.mxu0
    %v1006 = vadd.f32 0.0, %v1005
    %v1007 = vpop.f32.mrf.mxu0
    %1008 = vmatprep.mubr.f32.mxu0 0.0
    %1009 = vmatmul.mubr.f32.gmra.mxu0 %v908
    %v1010 = vpop.f32.mrf.mxu0
    %v1011 = vadd.f32 0.0, %v1010
    %v1012 = vpop.f32.mrf.mxu0
    %1013 = vmatprep.mubr.f32.mxu0 0.0
    %1014 = vmatmul.mubr.f32.gmra.mxu0 %v909
    %v1015 = vpop.f32.mrf.mxu0
    %v1016 = vadd.f32 0.0, %v1015
    %v1017 = vpop.f32.mrf.mxu0
    %1018 = vmatprep.mubr.f32.mxu0 0.0
    %1019 = vmatmul.mubr.f32.gmra.mxu0 %v910
    %v1020 = vpop.f32.mrf.mxu0
    %v1021 = vadd.f32 0.0, %v1020
    %v1022 = vpop.f32.mrf.mxu0
    %1023 = vmatprep.mubr.f32.mxu0 0.0
    %1024 = vmatmul.mubr.f32.gmra.mxu0 %v911
    %v1025 = vpop.f32.mrf.mxu0
    %v1026 = vadd.f32 0.0, %v1025
    %v1027 = vpop.f32.mrf.mxu0
    %1028 = vmatprep.mubr.f32.mxu0 0.0
    %1029 = vmatmul.mubr.f32.gmra.mxu0 %v912
    %v1030 = vpop.f32.mrf.mxu0
    %v1031 = vadd.f32 0.0, %v1030
    %v1032 = vpop.f32.mrf.mxu0
    %1033 = vmatprep.mubr.f32.mxu0 0.0
    %1034 = vmatmul.mubr.f32.gmra.mxu0 %v913
    %v1035 = vpop.f32.mrf.mxu0
    %v1036 = vadd.f32 0.0, %v1035
    %v1037 = vpop.f32.mrf.mxu0
    %1038 = vmatprep.mubr.f32.mxu0 0.0
    %1039 = vmatmul.mubr.f32.gmra.mxu0 %v914
    %v1040 = vpop.f32.mrf.mxu0
    %v1041 = vadd.f32 0.0, %v1040
    %v1042 = vpop.f32.mrf.mxu0
    %1043 = vmatprep.mubr.f32.mxu0 0.0
    %1044 = vmatmul.mubr.f32.gmra.mxu0 %v915
    %v1045 = vpop.f32.mrf.mxu0
    %v1046 = vadd.f32 0.0, %v1045
    %v1047 = vpop.f32.mrf.mxu0
    %1048 = vmatprep.mubr.f32.mxu0 0.0
    %1049 = vmatmul.mubr.f32.gmra.mxu0 %v916
    %v1050 = vpop.f32.mrf.mxu0
    %v1051 = vadd.f32 0.0, %v1050
    %v1052 = vpop.f32.mrf.mxu0
    %1053 = vmatprep.mubr.f32.mxu0 0.0
    %1054 = vmatmul.mubr.f32.gmra.mxu0 %v917
    %v1055 = vpop.f32.mrf.mxu0
    %v1056 = vadd.f32 0.0, %v1055
    %v1057 = vpop.f32.mrf.mxu0
    %1058 = vmatprep.mubr.f32.mxu0 0.0
    %1059 = vmatmul.mubr.f32.gmra.mxu0 %v918
    %v1060 = vpop.f32.mrf.mxu0
    %v1061 = vadd.f32 0.0, %v1060
    %v1062 = vpop.f32.mrf.mxu0
    %1063 = vmatprep.mubr.f32.mxu0 0.0
    %1064 = vmatmul.mubr.f32.gmra.mxu0 %v919
    %v1065 = vpop.f32.mrf.mxu0
    %v1066 = vadd.f32 0.0, %v1065
    %v1067 = vpop.f32.mrf.mxu0
    %1068 = vmatprep.mubr.f32.mxu0 0.0
    %1069 = vmatmul.mubr.f32.gmra.mxu0 %v920
    %v1070 = vpop.f32.mrf.mxu0
    %v1071 = vadd.f32 0.0, %v1070
    %v1072 = vpop.f32.mrf.mxu0
    %1073 = vmatprep.mubr.f32.mxu0 0.0
    %1074 = vmatmul.mubr.f32.gmra.mxu0 %v921
    %v1075 = vpop.f32.mrf.mxu0
    %v1076 = vadd.f32 0.0, %v1075
    %v1077 = vpop.f32.mrf.mxu0
    %1078 = vmatprep.mubr.f32.mxu0 0.0
    %1079 = vmatmul.mubr.f32.gmra.mxu0 %v922
    %v1080 = vpop.f32.mrf.mxu0
    %v1081 = vadd.f32 0.0, %v1080
    %v1082 = vpop.f32.mrf.mxu0
    %1083 = vdwg.mxu0
    %v1084 = vld [vmem:[%s3] sm:$0x1]
    %v1085 = vld [vmem:[%s4] sm:$0x1]
    %v1087 = vlaneseq
    %v1088 = vshrl.u32 %v1087, 7
    %v1089 = vsub.s32 0, %v1088
    %v1090 = vrot.slane %v1084, %v1089
    %v1092 = vsub.f32 %v1006, %v1090
    %v1093 = vsub.f32 %v1011, %v1090
    %v1094 = vsub.f32 %v1016, %v1090
    %v1095 = vsub.f32 %v1021, %v1090
    %v1096 = vsub.f32 %v1026, %v1090
    %v1097 = vsub.f32 %v1031, %v1090
    %v1098 = vsub.f32 %v1036, %v1090
    %v1099 = vsub.f32 %v1041, %v1090
    %v1100 = vsub.f32 %v1046, %v1090
    %v1101 = vsub.f32 %v1051, %v1090
    %v1102 = vsub.f32 %v1056, %v1090
    %v1103 = vsub.f32 %v1061, %v1090
    %v1104 = vsub.f32 %v1066, %v1090
    %v1105 = vsub.f32 %v1071, %v1090
    %v1106 = vsub.f32 %v1076, %v1090
    %v1107 = vsub.f32 %v1081, %v1090
    %v1108 = vmul.f32 %v1092, 0.5
    %v1109 = vmul.f32 %v1093, 0.5
    %v1110 = vmul.f32 %v1094, 0.5
    %v1111 = vmul.f32 %v1095, 0.5
    %v1112 = vmul.f32 %v1096, 0.5
    %v1113 = vmul.f32 %v1097, 0.5
    %v1114 = vmul.f32 %v1098, 0.5
    %v1115 = vmul.f32 %v1099, 0.5
    %v1116 = vmul.f32 %v1100, 0.5
    %v1117 = vmul.f32 %v1101, 0.5
    %v1118 = vmul.f32 %v1102, 0.5
    %v1119 = vmul.f32 %v1103, 0.5
    %v1120 = vmul.f32 %v1104, 0.5
    %v1121 = vmul.f32 %v1105, 0.5
    %v1122 = vmul.f32 %v1106, 0.5
    %v1123 = vmul.f32 %v1107, 0.5
    %v1124 = vtanh.pop %v1108
    %v1125 = vtanh.pop %v1109
    %v1126 = vtanh.pop %v1110
    %v1127 = vtanh.pop %v1111
    %v1128 = vtanh.pop %v1112
    %v1129 = vtanh.pop %v1113
    %v1130 = vtanh.pop %v1114
    %v1131 = vtanh.pop %v1115
    %v1132 = vtanh.pop %v1116
    %v1133 = vtanh.pop %v1117
    %v1134 = vtanh.pop %v1118
    %v1135 = vtanh.pop %v1119
    %v1136 = vtanh.pop %v1120
    %v1137 = vtanh.pop %v1121
    %v1138 = vtanh.pop %v1122
    %v1139 = vtanh.pop %v1123
    %v1140 = vmul.f32 %v1124, 0.5
    %v1141 = vmul.f32 %v1125, 0.5
    %v1142 = vmul.f32 %v1126, 0.5
    %v1143 = vmul.f32 %v1127, 0.5
    %v1144 = vmul.f32 %v1128, 0.5
    %v1145 = vmul.f32 %v1129, 0.5
    %v1146 = vmul.f32 %v1130, 0.5
    %v1147 = vmul.f32 %v1131, 0.5
    %v1148 = vmul.f32 %v1132, 0.5
    %v1149 = vmul.f32 %v1133, 0.5
    %v1150 = vmul.f32 %v1134, 0.5
    %v1151 = vmul.f32 %v1135, 0.5
    %v1152 = vmul.f32 %v1136, 0.5
    %v1153 = vmul.f32 %v1137, 0.5
    %v1154 = vmul.f32 %v1138, 0.5
    %v1155 = vmul.f32 %v1139, 0.5
    %v1156 = vadd.f32 %v1140, 0.5
    %v1157 = vadd.f32 %v1141, 0.5
    %v1158 = vadd.f32 %v1142, 0.5
    %v1159 = vadd.f32 %v1143, 0.5
    %v1160 = vadd.f32 %v1144, 0.5
    %v1161 = vadd.f32 %v1145, 0.5
    %v1162 = vadd.f32 %v1146, 0.5
    %v1163 = vadd.f32 %v1147, 0.5
    %v1164 = vadd.f32 %v1148, 0.5
    %v1165 = vadd.f32 %v1149, 0.5
    %v1166 = vadd.f32 %v1150, 0.5
    %v1167 = vadd.f32 %v1151, 0.5
    %v1168 = vadd.f32 %v1152, 0.5
    %v1169 = vadd.f32 %v1153, 0.5
    %v1170 = vadd.f32 %v1154, 0.5
    %v1171 = vadd.f32 %v1155, 0.5
    %v1173 = vlaneseq
    %v1174 = vshrl.u32 %v1173, 7
    %v1175 = vsub.s32 0, %v1174
    %v1176 = vrot.slane %v1085, %v1175
    %v1178 = vmul.f32 %v1156, %v1176
    %v1179 = vmul.f32 %v1157, %v1176
    %v1180 = vmul.f32 %v1158, %v1176
    %v1181 = vmul.f32 %v1159, %v1176
    %v1182 = vmul.f32 %v1160, %v1176
    %v1183 = vmul.f32 %v1161, %v1176
    %v1184 = vmul.f32 %v1162, %v1176
    %v1185 = vmul.f32 %v1163, %v1176
    %v1186 = vmul.f32 %v1164, %v1176
    %v1187 = vmul.f32 %v1165, %v1176
    %v1188 = vmul.f32 %v1166, %v1176
    %v1189 = vmul.f32 %v1167, %v1176
    %v1190 = vmul.f32 %v1168, %v1176
    %v1191 = vmul.f32 %v1169, %v1176
    %v1192 = vmul.f32 %v1170, %v1176
    %v1193 = vmul.f32 %v1171, %v1176
    %v1194 = vlaneseq
    %v1195 = vand.u32 %v1194, 127
    %v1196 = vld [vmem:[%s5] sm:$0x1]
    %v1197 = vlaneseq
    %v1198 = vshrl.u32 %v1197, 7
    %v1199 = vsub.s32 0, %v1198
    %v1200 = vrot.slane %v1196, %v1199
    %v1201 = vmul.f32 %v1178, %v1200
    %v1202 = vmul.f32 %v1179, %v1200
    %v1203 = vmul.f32 %v1180, %v1200
    %v1204 = vmul.f32 %v1181, %v1200
    %v1205 = vmul.f32 %v1182, %v1200
    %v1206 = vmul.f32 %v1183, %v1200
    %v1207 = vmul.f32 %v1184, %v1200
    %v1208 = vmul.f32 %v1185, %v1200
    %v1209 = vmul.f32 %v1186, %v1200
    %v1210 = vmul.f32 %v1187, %v1200
    %v1211 = vmul.f32 %v1188, %v1200
    %v1212 = vmul.f32 %v1189, %v1200
    %v1213 = vmul.f32 %v1190, %v1200
    %v1214 = vmul.f32 %v1191, %v1200
    %v1215 = vmul.f32 %v1192, %v1200
    %v1216 = vmul.f32 %v1193, %v1200
    %1217 = vadd.xlane.f32.xlu0 %v1201
    %v1218 = vpop.xlane.xlu0 %1217
    %1219 = vadd.xlane.f32.xlu0 %v1202
    %v1220 = vpop.xlane.xlu0 %1219
    %1221 = vadd.xlane.f32.xlu0 %v1203
    %v1222 = vpop.xlane.xlu0 %1221
    %1223 = vadd.xlane.f32.xlu0 %v1204
    %v1224 = vpop.xlane.xlu0 %1223
    %1225 = vadd.xlane.f32.xlu0 %v1205
    %v1226 = vpop.xlane.xlu0 %1225
    %1227 = vadd.xlane.f32.xlu0 %v1206
    %v1228 = vpop.xlane.xlu0 %1227
    %1229 = vadd.xlane.f32.xlu0 %v1207
    %v1230 = vpop.xlane.xlu0 %1229
    %1231 = vadd.xlane.f32.xlu0 %v1208
    %v1232 = vpop.xlane.xlu0 %1231
    %1233 = vadd.xlane.f32.xlu0 %v1209
    %v1234 = vpop.xlane.xlu0 %1233
    %1235 = vadd.xlane.f32.xlu0 %v1210
    %v1236 = vpop.xlane.xlu0 %1235
    %1237 = vadd.xlane.f32.xlu0 %v1211
    %v1238 = vpop.xlane.xlu0 %1237
    %1239 = vadd.xlane.f32.xlu0 %v1212
    %v1240 = vpop.xlane.xlu0 %1239
    %1241 = vadd.xlane.f32.xlu0 %v1213
    %v1242 = vpop.xlane.xlu0 %1241
    %1243 = vadd.xlane.f32.xlu0 %v1214
    %v1244 = vpop.xlane.xlu0 %1243
    %1245 = vadd.xlane.f32.xlu0 %v1215
    %v1246 = vpop.xlane.xlu0 %1245
    %1247 = vadd.xlane.f32.xlu0 %v1216
    %v1248 = vpop.xlane.xlu0 %1247
    %v1249 = vadd.f32 %v1006, %v1218
    %v1250 = vadd.f32 %v1011, %v1220
    %v1251 = vadd.f32 %v1016, %v1222
    %v1252 = vadd.f32 %v1021, %v1224
    %v1253 = vadd.f32 %v1026, %v1226
    %v1254 = vadd.f32 %v1031, %v1228
    %v1255 = vadd.f32 %v1036, %v1230
    %v1256 = vadd.f32 %v1041, %v1232
    %v1257 = vadd.f32 %v1046, %v1234
    %v1258 = vadd.f32 %v1051, %v1236
    %v1259 = vadd.f32 %v1056, %v1238
    %v1260 = vadd.f32 %v1061, %v1240
    %v1261 = vadd.f32 %v1066, %v1242
    %v1262 = vadd.f32 %v1071, %v1244
    %v1263 = vadd.f32 %v1076, %v1246
    %v1264 = vadd.f32 %v1081, %v1248
    %v1265 = vsub.f32 %v1249, %v1090
    %v1266 = vsub.f32 %v1250, %v1090
    %v1267 = vsub.f32 %v1251, %v1090
    %v1268 = vsub.f32 %v1252, %v1090
    %v1269 = vsub.f32 %v1253, %v1090
    %v1270 = vsub.f32 %v1254, %v1090
    %v1271 = vsub.f32 %v1255, %v1090
    %v1272 = vsub.f32 %v1256, %v1090
    %v1273 = vsub.f32 %v1257, %v1090
    %v1274 = vsub.f32 %v1258, %v1090
    %v1275 = vsub.f32 %v1259, %v1090
    %v1276 = vsub.f32 %v1260, %v1090
    %v1277 = vsub.f32 %v1261, %v1090
    %v1278 = vsub.f32 %v1262, %v1090
    %v1279 = vsub.f32 %v1263, %v1090
    %v1280 = vsub.f32 %v1264, %v1090
    %v1281 = vmul.f32 %v1265, 0.5
    %v1282 = vmul.f32 %v1266, 0.5
    %v1283 = vmul.f32 %v1267, 0.5
    %v1284 = vmul.f32 %v1268, 0.5
    %v1285 = vmul.f32 %v1269, 0.5
    %v1286 = vmul.f32 %v1270, 0.5
    %v1287 = vmul.f32 %v1271, 0.5
    %v1288 = vmul.f32 %v1272, 0.5
    %v1289 = vmul.f32 %v1273, 0.5
    %v1290 = vmul.f32 %v1274, 0.5
    %v1291 = vmul.f32 %v1275, 0.5
    %v1292 = vmul.f32 %v1276, 0.5
    %v1293 = vmul.f32 %v1277, 0.5
    %v1294 = vmul.f32 %v1278, 0.5
    %v1295 = vmul.f32 %v1279, 0.5
    %v1296 = vmul.f32 %v1280, 0.5
    %v1297 = vtanh.pop %v1281
    %v1298 = vtanh.pop %v1282
    %v1299 = vtanh.pop %v1283
    %v1300 = vtanh.pop %v1284
    %v1301 = vtanh.pop %v1285
    %v1302 = vtanh.pop %v1286
    %v1303 = vtanh.pop %v1287
    %v1304 = vtanh.pop %v1288
    %v1305 = vtanh.pop %v1289
    %v1306 = vtanh.pop %v1290
    %v1307 = vtanh.pop %v1291
    %v1308 = vtanh.pop %v1292
    %v1309 = vtanh.pop %v1293
    %v1310 = vtanh.pop %v1294
    %v1311 = vtanh.pop %v1295
    %v1312 = vtanh.pop %v1296
    %v1313 = vmul.f32 %v1297, 0.5
    %v1314 = vmul.f32 %v1298, 0.5
    %v1315 = vmul.f32 %v1299, 0.5
    %v1316 = vmul.f32 %v1300, 0.5
    %v1317 = vmul.f32 %v1301, 0.5
    %v1318 = vmul.f32 %v1302, 0.5
    %v1319 = vmul.f32 %v1303, 0.5
    %v1320 = vmul.f32 %v1304, 0.5
    %v1321 = vmul.f32 %v1305, 0.5
    %v1322 = vmul.f32 %v1306, 0.5
    %v1323 = vmul.f32 %v1307, 0.5
    %v1324 = vmul.f32 %v1308, 0.5
    %v1325 = vmul.f32 %v1309, 0.5
    %v1326 = vmul.f32 %v1310, 0.5
    %v1327 = vmul.f32 %v1311, 0.5
    %v1328 = vmul.f32 %v1312, 0.5
    %v1329 = vadd.f32 %v1313, 0.5
    %v1330 = vadd.f32 %v1314, 0.5
    %v1331 = vadd.f32 %v1315, 0.5
    %v1332 = vadd.f32 %v1316, 0.5
    %v1333 = vadd.f32 %v1317, 0.5
    %v1334 = vadd.f32 %v1318, 0.5
    %v1335 = vadd.f32 %v1319, 0.5
    %v1336 = vadd.f32 %v1320, 0.5
    %v1337 = vadd.f32 %v1321, 0.5
    %v1338 = vadd.f32 %v1322, 0.5
    %v1339 = vadd.f32 %v1323, 0.5
    %v1340 = vadd.f32 %v1324, 0.5
    %v1341 = vadd.f32 %v1325, 0.5
    %v1342 = vadd.f32 %v1326, 0.5
    %v1343 = vadd.f32 %v1327, 0.5
    %v1344 = vadd.f32 %v1328, 0.5
    %v1345 = vmul.f32 %v1329, %v1176
    %v1346 = vmul.f32 %v1330, %v1176
    %v1347 = vmul.f32 %v1331, %v1176
    %v1348 = vmul.f32 %v1332, %v1176
    %v1349 = vmul.f32 %v1333, %v1176
    %v1350 = vmul.f32 %v1334, %v1176
    %v1351 = vmul.f32 %v1335, %v1176
    %v1352 = vmul.f32 %v1336, %v1176
    %v1353 = vmul.f32 %v1337, %v1176
    %v1354 = vmul.f32 %v1338, %v1176
    %v1355 = vmul.f32 %v1339, %v1176
    %v1356 = vmul.f32 %v1340, %v1176
    %v1357 = vmul.f32 %v1341, %v1176
    %v1358 = vmul.f32 %v1342, %v1176
    %v1359 = vmul.f32 %v1343, %v1176
    %v1360 = vmul.f32 %v1344, %v1176
    %vm1361 = vcmp.eq.s32.totalorder %v1195, 1
    %v1362 = vsel %vm1361, 1, 0
    %vm1363 = vcmp.eq.s32.totalorder %v1362, 1
    %1365 = vset.pattern.permute.xlu0 1
    %1366 = vperm.xlu0 %1365, %v1345
    %v1367 = vpop.permute.xlu0 %1366
    %1370 = vset.pattern.permute.xlu0 1
    %1371 = vperm.xlu0 %1370, %v1346
    %v1372 = vpop.permute.xlu0 %1371
    %1375 = vset.pattern.permute.xlu0 1
    %1376 = vperm.xlu0 %1375, %v1347
    %v1377 = vpop.permute.xlu0 %1376
    %1380 = vset.pattern.permute.xlu0 1
    %1381 = vperm.xlu0 %1380, %v1348
    %v1382 = vpop.permute.xlu0 %1381
    %1385 = vset.pattern.permute.xlu0 1
    %1386 = vperm.xlu0 %1385, %v1349
    %v1387 = vpop.permute.xlu0 %1386
    %1390 = vset.pattern.permute.xlu0 1
    %1391 = vperm.xlu0 %1390, %v1350
    %v1392 = vpop.permute.xlu0 %1391
    %1395 = vset.pattern.permute.xlu0 1
    %1396 = vperm.xlu0 %1395, %v1351
    %v1397 = vpop.permute.xlu0 %1396
    %1400 = vset.pattern.permute.xlu0 1
    %1401 = vperm.xlu0 %1400, %v1352
    %v1402 = vpop.permute.xlu0 %1401
    %1405 = vset.pattern.permute.xlu0 1
    %1406 = vperm.xlu0 %1405, %v1353
    %v1407 = vpop.permute.xlu0 %1406
    %1410 = vset.pattern.permute.xlu0 1
    %1411 = vperm.xlu0 %1410, %v1354
    %v1412 = vpop.permute.xlu0 %1411
    %1415 = vset.pattern.permute.xlu0 1
    %1416 = vperm.xlu0 %1415, %v1355
    %v1417 = vpop.permute.xlu0 %1416
    %1420 = vset.pattern.permute.xlu0 1
    %1421 = vperm.xlu0 %1420, %v1356
    %v1422 = vpop.permute.xlu0 %1421
    %1425 = vset.pattern.permute.xlu0 1
    %1426 = vperm.xlu0 %1425, %v1357
    %v1427 = vpop.permute.xlu0 %1426
    %1430 = vset.pattern.permute.xlu0 1
    %1431 = vperm.xlu0 %1430, %v1358
    %v1432 = vpop.permute.xlu0 %1431
    %1435 = vset.pattern.permute.xlu0 1
    %1436 = vperm.xlu0 %1435, %v1359
    %v1437 = vpop.permute.xlu0 %1436
    %1440 = vset.pattern.permute.xlu0 1
    %1441 = vperm.xlu0 %1440, %v1360
    %v1442 = vpop.permute.xlu0 %1441
    %v1444 = vsel %vm1363, %v1367, %v1178
    %v1445 = vsel %vm1363, %v1372, %v1179
    %v1446 = vsel %vm1363, %v1377, %v1180
    %v1447 = vsel %vm1363, %v1382, %v1181
    %v1448 = vsel %vm1363, %v1387, %v1182
    %v1449 = vsel %vm1363, %v1392, %v1183
    %v1450 = vsel %vm1363, %v1397, %v1184
    %v1451 = vsel %vm1363, %v1402, %v1185
    %v1452 = vsel %vm1363, %v1407, %v1186
    %v1453 = vsel %vm1363, %v1412, %v1187
    %v1454 = vsel %vm1363, %v1417, %v1188
    %v1455 = vsel %vm1363, %v1422, %v1189
    %v1456 = vsel %vm1363, %v1427, %v1190
    %v1457 = vsel %vm1363, %v1432, %v1191
    %v1458 = vsel %vm1363, %v1437, %v1192
    %v1459 = vsel %vm1363, %v1442, %v1193
    %v1460 = vld [vmem:[%s5 + $0x1] sm:$0x1]
    %v1461 = vlaneseq
    %v1462 = vshrl.u32 %v1461, 7
    %v1463 = vsub.s32 0, %v1462
    %v1464 = vrot.slane %v1460, %v1463
    %v1465 = vmul.f32 %v1444, %v1464
    %v1466 = vmul.f32 %v1445, %v1464
    %v1467 = vmul.f32 %v1446, %v1464
    %v1468 = vmul.f32 %v1447, %v1464
    %v1469 = vmul.f32 %v1448, %v1464
    %v1470 = vmul.f32 %v1449, %v1464
    %v1471 = vmul.f32 %v1450, %v1464
    %v1472 = vmul.f32 %v1451, %v1464
    %v1473 = vmul.f32 %v1452, %v1464
    %v1474 = vmul.f32 %v1453, %v1464
    %v1475 = vmul.f32 %v1454, %v1464
    %v1476 = vmul.f32 %v1455, %v1464
    %v1477 = vmul.f32 %v1456, %v1464
    %v1478 = vmul.f32 %v1457, %v1464
    %v1479 = vmul.f32 %v1458, %v1464
    %v1480 = vmul.f32 %v1459, %v1464
    %1481 = vadd.xlane.f32.xlu0 %v1465
    %v1482 = vpop.xlane.xlu0 %1481
    %1483 = vadd.xlane.f32.xlu0 %v1466
    %v1484 = vpop.xlane.xlu0 %1483
    %1485 = vadd.xlane.f32.xlu0 %v1467
    %v1486 = vpop.xlane.xlu0 %1485
    %1487 = vadd.xlane.f32.xlu0 %v1468
    %v1488 = vpop.xlane.xlu0 %1487
    %1489 = vadd.xlane.f32.xlu0 %v1469
    %v1490 = vpop.xlane.xlu0 %1489
    %1491 = vadd.xlane.f32.xlu0 %v1470
    %v1492 = vpop.xlane.xlu0 %1491
    %1493 = vadd.xlane.f32.xlu0 %v1471
    %v1494 = vpop.xlane.xlu0 %1493
    %1495 = vadd.xlane.f32.xlu0 %v1472
    %v1496 = vpop.xlane.xlu0 %1495
    %1497 = vadd.xlane.f32.xlu0 %v1473
    %v1498 = vpop.xlane.xlu0 %1497
    %1499 = vadd.xlane.f32.xlu0 %v1474
    %v1500 = vpop.xlane.xlu0 %1499
    %1501 = vadd.xlane.f32.xlu0 %v1475
    %v1502 = vpop.xlane.xlu0 %1501
    %1503 = vadd.xlane.f32.xlu0 %v1476
    %v1504 = vpop.xlane.xlu0 %1503
    %1505 = vadd.xlane.f32.xlu0 %v1477
    %v1506 = vpop.xlane.xlu0 %1505
    %1507 = vadd.xlane.f32.xlu0 %v1478
    %v1508 = vpop.xlane.xlu0 %1507
    %1509 = vadd.xlane.f32.xlu0 %v1479
    %v1510 = vpop.xlane.xlu0 %1509
    %1511 = vadd.xlane.f32.xlu0 %v1480
    %v1512 = vpop.xlane.xlu0 %1511
    %v1513 = vadd.f32 %v1006, %v1482
    %v1514 = vadd.f32 %v1011, %v1484
    %v1515 = vadd.f32 %v1016, %v1486
    %v1516 = vadd.f32 %v1021, %v1488
    %v1517 = vadd.f32 %v1026, %v1490
    %v1518 = vadd.f32 %v1031, %v1492
    %v1519 = vadd.f32 %v1036, %v1494
    %v1520 = vadd.f32 %v1041, %v1496
    %v1521 = vadd.f32 %v1046, %v1498
    %v1522 = vadd.f32 %v1051, %v1500
    %v1523 = vadd.f32 %v1056, %v1502
    %v1524 = vadd.f32 %v1061, %v1504
    %v1525 = vadd.f32 %v1066, %v1506
    %v1526 = vadd.f32 %v1071, %v1508
    %v1527 = vadd.f32 %v1076, %v1510
    %v1528 = vadd.f32 %v1081, %v1512
    %v1529 = vsub.f32 %v1513, %v1090
    %v1530 = vsub.f32 %v1514, %v1090
    %v1531 = vsub.f32 %v1515, %v1090
    %v1532 = vsub.f32 %v1516, %v1090
    %v1533 = vsub.f32 %v1517, %v1090
    %v1534 = vsub.f32 %v1518, %v1090
    %v1535 = vsub.f32 %v1519, %v1090
    %v1536 = vsub.f32 %v1520, %v1090
    %v1537 = vsub.f32 %v1521, %v1090
    %v1538 = vsub.f32 %v1522, %v1090
    %v1539 = vsub.f32 %v1523, %v1090
    %v1540 = vsub.f32 %v1524, %v1090
    %v1541 = vsub.f32 %v1525, %v1090
    %v1542 = vsub.f32 %v1526, %v1090
    %v1543 = vsub.f32 %v1527, %v1090
    %v1544 = vsub.f32 %v1528, %v1090
    %v1545 = vmul.f32 %v1529, 0.5
    %v1546 = vmul.f32 %v1530, 0.5
    %v1547 = vmul.f32 %v1531, 0.5
    %v1548 = vmul.f32 %v1532, 0.5
    %v1549 = vmul.f32 %v1533, 0.5
    %v1550 = vmul.f32 %v1534, 0.5
    %v1551 = vmul.f32 %v1535, 0.5
    %v1552 = vmul.f32 %v1536, 0.5
    %v1553 = vmul.f32 %v1537, 0.5
    %v1554 = vmul.f32 %v1538, 0.5
    %v1555 = vmul.f32 %v1539, 0.5
    %v1556 = vmul.f32 %v1540, 0.5
    %v1557 = vmul.f32 %v1541, 0.5
    %v1558 = vmul.f32 %v1542, 0.5
    %v1559 = vmul.f32 %v1543, 0.5
    %v1560 = vmul.f32 %v1544, 0.5
    %v1561 = vtanh.pop %v1545
    %v1562 = vtanh.pop %v1546
    %v1563 = vtanh.pop %v1547
    %v1564 = vtanh.pop %v1548
    %v1565 = vtanh.pop %v1549
    %v1566 = vtanh.pop %v1550
    %v1567 = vtanh.pop %v1551
    %v1568 = vtanh.pop %v1552
    %v1569 = vtanh.pop %v1553
    %v1570 = vtanh.pop %v1554
    %v1571 = vtanh.pop %v1555
    %v1572 = vtanh.pop %v1556
    %v1573 = vtanh.pop %v1557
    %v1574 = vtanh.pop %v1558
    %v1575 = vtanh.pop %v1559
    %v1576 = vtanh.pop %v1560
    %v1577 = vmul.f32 %v1561, 0.5
    %v1578 = vmul.f32 %v1562, 0.5
    %v1579 = vmul.f32 %v1563, 0.5
    %v1580 = vmul.f32 %v1564, 0.5
    %v1581 = vmul.f32 %v1565, 0.5
    %v1582 = vmul.f32 %v1566, 0.5
    %v1583 = vmul.f32 %v1567, 0.5
    %v1584 = vmul.f32 %v1568, 0.5
    %v1585 = vmul.f32 %v1569, 0.5
    %v1586 = vmul.f32 %v1570, 0.5
    %v1587 = vmul.f32 %v1571, 0.5
    %v1588 = vmul.f32 %v1572, 0.5
    %v1589 = vmul.f32 %v1573, 0.5
    %v1590 = vmul.f32 %v1574, 0.5
    %v1591 = vmul.f32 %v1575, 0.5
    %v1592 = vmul.f32 %v1576, 0.5
    %v1593 = vadd.f32 %v1577, 0.5
    %v1594 = vadd.f32 %v1578, 0.5
    %v1595 = vadd.f32 %v1579, 0.5
    %v1596 = vadd.f32 %v1580, 0.5
    %v1597 = vadd.f32 %v1581, 0.5
    %v1598 = vadd.f32 %v1582, 0.5
    %v1599 = vadd.f32 %v1583, 0.5
    %v1600 = vadd.f32 %v1584, 0.5
    %v1601 = vadd.f32 %v1585, 0.5
    %v1602 = vadd.f32 %v1586, 0.5
    %v1603 = vadd.f32 %v1587, 0.5
    %v1604 = vadd.f32 %v1588, 0.5
    %v1605 = vadd.f32 %v1589, 0.5
    %v1606 = vadd.f32 %v1590, 0.5
    %v1607 = vadd.f32 %v1591, 0.5
    %v1608 = vadd.f32 %v1592, 0.5
    %v1609 = vmul.f32 %v1593, %v1176
    %v1610 = vmul.f32 %v1594, %v1176
    %v1611 = vmul.f32 %v1595, %v1176
    %v1612 = vmul.f32 %v1596, %v1176
    %v1613 = vmul.f32 %v1597, %v1176
    %v1614 = vmul.f32 %v1598, %v1176
    %v1615 = vmul.f32 %v1599, %v1176
    %v1616 = vmul.f32 %v1600, %v1176
    %v1617 = vmul.f32 %v1601, %v1176
    %v1618 = vmul.f32 %v1602, %v1176
    %v1619 = vmul.f32 %v1603, %v1176
    %v1620 = vmul.f32 %v1604, %v1176
    %v1621 = vmul.f32 %v1605, %v1176
    %v1622 = vmul.f32 %v1606, %v1176
    %v1623 = vmul.f32 %v1607, %v1176
    %v1624 = vmul.f32 %v1608, %v1176
    %vm1625 = vcmp.eq.s32.totalorder %v1195, 0
    %v1626 = vsel %vm1625, 1, 0
    %vm1627 = vcmp.eq.s32.totalorder %v1626, 1
    %1629 = vset.pattern.permute.xlu0 0
    %1630 = vperm.xlu0 %1629, %v1609
    %v1631 = vpop.permute.xlu0 %1630
    %1634 = vset.pattern.permute.xlu0 0
    %1635 = vperm.xlu0 %1634, %v1610
    %v1636 = vpop.permute.xlu0 %1635
    %1639 = vset.pattern.permute.xlu0 0
    %1640 = vperm.xlu0 %1639, %v1611
    %v1641 = vpop.permute.xlu0 %1640
    %1644 = vset.pattern.permute.xlu0 0
    %1645 = vperm.xlu0 %1644, %v1612
    %v1646 = vpop.permute.xlu0 %1645
    %1649 = vset.pattern.permute.xlu0 0
    %1650 = vperm.xlu0 %1649, %v1613
    %v1651 = vpop.permute.xlu0 %1650
    %1654 = vset.pattern.permute.xlu0 0
    %1655 = vperm.xlu0 %1654, %v1614
    %v1656 = vpop.permute.xlu0 %1655
    %1659 = vset.pattern.permute.xlu0 0
    %1660 = vperm.xlu0 %1659, %v1615
    %v1661 = vpop.permute.xlu0 %1660
    %1664 = vset.pattern.permute.xlu0 0
    %1665 = vperm.xlu0 %1664, %v1616
    %v1666 = vpop.permute.xlu0 %1665
    %1669 = vset.pattern.permute.xlu0 0
    %1670 = vperm.xlu0 %1669, %v1617
    %v1671 = vpop.permute.xlu0 %1670
    %1674 = vset.pattern.permute.xlu0 0
    %1675 = vperm.xlu0 %1674, %v1618
    %v1676 = vpop.permute.xlu0 %1675
    %1679 = vset.pattern.permute.xlu0 0
    %1680 = vperm.xlu0 %1679, %v1619
    %v1681 = vpop.permute.xlu0 %1680
    %1684 = vset.pattern.permute.xlu0 0
    %1685 = vperm.xlu0 %1684, %v1620
    %v1686 = vpop.permute.xlu0 %1685
    %1689 = vset.pattern.permute.xlu0 0
    %1690 = vperm.xlu0 %1689, %v1621
    %v1691 = vpop.permute.xlu0 %1690
    %1694 = vset.pattern.permute.xlu0 0
    %1695 = vperm.xlu0 %1694, %v1622
    %v1696 = vpop.permute.xlu0 %1695
    %1699 = vset.pattern.permute.xlu0 0
    %1700 = vperm.xlu0 %1699, %v1623
    %v1701 = vpop.permute.xlu0 %1700
    %1704 = vset.pattern.permute.xlu0 0
    %1705 = vperm.xlu0 %1704, %v1624
    %v1706 = vpop.permute.xlu0 %1705
    %v1708 = vsel %vm1627, %v1631, %v1444
    %v1709 = vsel %vm1627, %v1636, %v1445
    %v1710 = vsel %vm1627, %v1641, %v1446
    %v1711 = vsel %vm1627, %v1646, %v1447
    %v1712 = vsel %vm1627, %v1651, %v1448
    %v1713 = vsel %vm1627, %v1656, %v1449
    %v1714 = vsel %vm1627, %v1661, %v1450
    %v1715 = vsel %vm1627, %v1666, %v1451
    %v1716 = vsel %vm1627, %v1671, %v1452
    %v1717 = vsel %vm1627, %v1676, %v1453
    %v1718 = vsel %vm1627, %v1681, %v1454
    %v1719 = vsel %vm1627, %v1686, %v1455
    %v1720 = vsel %vm1627, %v1691, %v1456
    %v1721 = vsel %vm1627, %v1696, %v1457
    %v1722 = vsel %vm1627, %v1701, %v1458
    %v1723 = vsel %vm1627, %v1706, %v1459
    %1724 = vst [vmem:[#allocation9] sm:$0xff] %v1708
    %1725 = vst [vmem:[#allocation9 + $0x8] sm:$0xff] %v1709
    %1726 = vst [vmem:[#allocation9 + $0x10] sm:$0xff] %v1710
    %1727 = vst [vmem:[#allocation9 + $0x18] sm:$0xff] %v1711
    %1728 = vst [vmem:[#allocation9 + $0x20] sm:$0xff] %v1712
    %1729 = vst [vmem:[#allocation9 + $0x28] sm:$0xff] %v1713
    %1730 = vst [vmem:[#allocation9 + $0x30] sm:$0xff] %v1714
    %1731 = vst [vmem:[#allocation9 + $0x38] sm:$0xff] %v1715
    %1732 = vst [vmem:[#allocation9 + $0x40] sm:$0xff] %v1716
    %1733 = vst [vmem:[#allocation9 + $0x48] sm:$0xff] %v1717
    %1734 = vst [vmem:[#allocation9 + $0x50] sm:$0xff] %v1718
    %1735 = vst [vmem:[#allocation9 + $0x58] sm:$0xff] %v1719
    %1736 = vst [vmem:[#allocation9 + $0x60] sm:$0xff] %v1720
    %1737 = vst [vmem:[#allocation9 + $0x68] sm:$0xff] %v1721
    %1738 = vst [vmem:[#allocation9 + $0x70] sm:$0xff] %v1722
    %1739 = vst [vmem:[#allocation9 + $0x78] sm:$0xff] %v1723
    // Predicated region
    $region46: #{tpu_custom_call.1} parent=1 // pred_check
      _
    $region47: #{tpu_custom_call.1} parent=1 // pred_check_branch
      %1741 = sbr.rel (0) target = $region49
    $region48: #{tpu_custom_call.1} parent=1 // pred_region
      %s1743 = ssub.s32 2048, 2048
      %1744 = vsyncadd [#allocation6], %s1743
      %s1745 = sshll.u32 [#allocation9], 4
      %s1746 = int_to_ptr.vmem [resolvable:$true] %s1745
      %1751 = dma.vmem_to_hbm [thread:$0]  %s1746, 2048, %s6, [#allocation6], 128, 128, 8
    $region49: #{tpu_custom_call.1} parent=1 // pred_fallthru
      _
    // Predicated region
    $region50: #{tpu_custom_call.1} parent=1 // pred_check
      _
    $region51: #{tpu_custom_call.1} parent=1 // pred_check_branch
      %1753 = sbr.rel (0) target = $region53
    $region52: #{tpu_custom_call.1} parent=1 // pred_region
      %1754 = dma.done [#allocation6], 2048
    $region53: #{tpu_custom_call.1} parent=1 // pred_fallthru
      _
    %1755 = vsyncpa [#allocation5], 1
    %1756 = vsyncpa [#allocation8], 1
    %1757 = vsyncpa [#allocation6], 1
  %1758 = vsyncmov [#allocation3]
  %s1759 = vpop.sfrf %1758
  %p1760 = scmp.eq.s32.totalorder %s1759, 0
  %p1761 = pneg %p1760
  %1763 = shalt.err (%p1761)
  %s1764 = scalar_lea.sflag [#allocation3], 1
  %1765 = vsyncmov %s1764
  %s1766 = vpop.sfrf %1765
  %p1767 = scmp.eq.s32.totalorder %s1766, 0
  %p1768 = pneg %p1767
  %1770 = shalt.err (%p1768)

</llo_original>
